<compile_context>
chip_gen: v7x
topology: tpu7x:2x2x1
jax: 0.10.0
libtpu: 0.0.40
codegen_flags: <defaults>
</compile_context>

<pallas_src>
import functools

import jax
import jax.numpy as jnp
from jax.experimental import pallas as pl
from jax.experimental.pallas import tpu as pltpu

LN_EPS = 1e-5  # PyTorch nn.LayerNorm default


def _layernorm(x, gamma, beta):
    # x: (rows, E) f32, gamma/beta: (E,)
    mu = jnp.mean(x, axis=-1, keepdims=True)
    var = jnp.mean((x - mu) ** 2, axis=-1, keepdims=True)
    return (x - mu) * jax.lax.rsqrt(var + LN_EPS) * gamma + beta


def _gelu_exact(x):
    # PyTorch nn.GELU default = exact erf formulation.
    return 0.5 * x * (1.0 + jax.lax.erf(x * 0.7071067811865476))


# ---------------------------------------------------------------------------
# Kernel 1: LayerNorm1 + single fused Q/K/V projection (no bias) over flattened
#           (B*W) rows.  Wqkv = [Wq/sqrt(hd) | Wk | Wv] (E, 3E) bf16; output is a
#           single lane-dense (TM, 3E) bf16 store.
# ---------------------------------------------------------------------------
def ln_qkv_kernel(x_ref, g_ref, b_ref, wqkv_ref, qkv_ref):
    xn = _layernorm(x_ref[...], g_ref[0], b_ref[0])           # (TM, E) f32
    qkv = jnp.dot(xn.astype(jnp.bfloat16), wqkv_ref[...],
                  preferred_element_type=jnp.float32)          # (TM, 3E) f32 acc
    qkv_ref[...] = qkv.astype(qkv_ref.dtype)


# ---------------------------------------------------------------------------
# Kernel 2 (fused, per batch element):
#   per-head attention (softmax(q k^T) v); each head's output is immediately
#   folded into the out-projection accumulator (+bias, +residual), then
#   LayerNorm2, MLP (+bias, exact GELU), second residual.  Dropouts = identity.
# ---------------------------------------------------------------------------
def attn_mlp_kernel(q_ref, k_ref, v_ref, x_ref, wo_ref, bo_ref, g2_ref, b2_ref,
                    w1_ref, b1_ref, w2_ref, b2b_ref, o_ref, *, nb_head, head_dim):
    x = x_ref[0]                                               # (W, E) f32
    # residual-1 accumulator: concat_h(o_h) @ Wo + bo + x == sum_h o_h @ Wo_h + bo + x
    acc = x + bo_ref[0]
    for h in range(nb_head):
        q = q_ref[0, h]                                        # (W, hd) bf16, pre-scaled
        k = k_ref[0, h]                                        # (W, hd) bf16
        v = v_ref[0, h]                                        # (W, hd) bf16
        s = jax.lax.dot_general(q, k, (((1,), (1,)), ((), ())),
                                preferred_element_type=jnp.float32)  # (W, W) f32
        s = s - jnp.max(s, axis=-1, keepdims=True)
        e = jnp.exp(s)
        p = e * pl.reciprocal(jnp.sum(e, axis=-1, keepdims=True), approx=True)
        o_h = jnp.dot(p.astype(jnp.bfloat16), v,
                      preferred_element_type=jnp.float32)      # (W, hd) f32
        acc = acc + jnp.dot(o_h.astype(jnp.bfloat16),
                            wo_ref[h * head_dim:(h + 1) * head_dim, :],
                            preferred_element_type=jnp.float32)
    y = acc                                                    # after residual 1
    yn = _layernorm(y, g2_ref[0], b2_ref[0])
    hmid = _gelu_exact(jnp.dot(yn.astype(jnp.bfloat16), w1_ref[...],
                               preferred_element_type=jnp.float32) + b1_ref[0])
    m = jnp.dot(hmid.astype(jnp.bfloat16), w2_ref[...],
                preferred_element_type=jnp.float32) + b2b_ref[0]
    o_ref[0] = (m + y).astype(o_ref.dtype)                     # residual 2


# ---------------------------------------------------------------------------
# One-time weight prep (hoisted out of the per-call path).
# ---------------------------------------------------------------------------
def prepare_params(params):
    E = params["wq"].shape[0]
    hd = E // params["nb_head"]
    q_scale = 1.0 / (hd ** 0.5)
    bf16 = jnp.bfloat16
    wqkv = jnp.concatenate(
        [params["wq"] * q_scale, params["wk"], params["wv"]], axis=1).astype(bf16)
    return {
        "wqkv": wqkv,                                  # (E, 3E) bf16, q pre-scaled
        "wo": params["wo"].astype(bf16),
        "w1": params["w1"].astype(bf16),
        "w2": params["w2"].astype(bf16),
        "ln1_g": params["ln1_g"], "ln1_b": params["ln1_b"],
        "ln2_g": params["ln2_g"], "ln2_b": params["ln2_b"],
        "bo": params["bo"], "b1": params["b1"], "b2": params["b2"],
    }


def _vmem_limit_bytes():
    # ~96 MiB on v5e/v6e (128 MiB physical VMEM), ~48 MiB on v7x (64 MiB physical).
    try:
        cap = pltpu.get_tpu_info().vmem_capacity_bytes
    except Exception:
        cap = 64 * 1024 * 1024
    return int(min(cap * 3 // 4, 100 * 1024 * 1024))


# ---------------------------------------------------------------------------
# Wrapper (single jit: weight prep is outside, reshapes between calls fuse here).
# ---------------------------------------------------------------------------
@functools.partial(jax.jit, static_argnames=("nb_head",))
def encoder_block(x, prep, *, nb_head):
    B, W, E = x.shape
    H = nb_head
    hd = E // H
    Hm = prep["w1"].shape[1]
    M = B * W
    f32 = jnp.float32
    bf16 = jnp.bfloat16
    vmem_limit = _vmem_limit_bytes()

    # --- stage 1: flatten (B, W) -> M rows; LN1 + fused QKV projection ----------
    x2 = x.reshape(M, E)
    TM = M if M <= 1024 else 512            # big row tiles: ~85% HBM roofline vs 63%@256
    row_in = pl.BlockSpec((TM, E), lambda i: (i, 0))
    row_out = pl.BlockSpec((TM, 3 * E), lambda i: (i, 0))   # lane-dense 3E-wide store
    vec = lambda n: pl.BlockSpec((1, n), lambda i: (0, 0))
    mat = lambda m, n: pl.BlockSpec((m, n), lambda i: (0, 0))

    cost1 = pl.CostEstimate(
        flops=6 * M * E * E + 8 * M * E,
        transcendentals=M,
        bytes_accessed=M * E * 4 + 3 * E * E * 2 + 3 * M * E * 2 + 2 * E * 4,
    )
    qkv = pl.pallas_call(
        ln_qkv_kernel,
        grid=(pl.cdiv(M, TM),),
        in_specs=[row_in, vec(E), vec(E), mat(E, 3 * E)],
        out_specs=row_out,
        out_shape=jax.ShapeDtypeStruct((M, 3 * E), bf16),
        compiler_params=pltpu.CompilerParams(
            dimension_semantics=("parallel",),
            vmem_limit_bytes=vmem_limit),
        cost_estimate=cost1,
    )(x2, prep["ln1_g"], prep["ln1_b"], prep["wqkv"])

    # Raw row-major head view, exactly PyTorch's q.view(B, nb_head, W, head_dim).
    # The lane-dim split (E -> H, hd) needs a relayout wherever it happens; XLA
    # does it here (padded partial stage-1 blocks see zero rows -> LN stays finite).
    qh = qkv[:, :E].reshape(B, H, W, hd)
    kh = qkv[:, E:2 * E].reshape(B, H, W, hd)
    vh = qkv[:, 2 * E:].reshape(B, H, W, hd)

    # --- stage 2: fused attention + out-proj + residual + LN2 + MLP + residual ---
    head_blk = pl.BlockSpec((1, H, W, hd), lambda b: (b, 0, 0, 0))
    xrow = pl.BlockSpec((1, W, E), lambda b: (b, 0, 0))
    vec2 = lambda n: pl.BlockSpec((1, n), lambda b: (0, 0))
    mat2 = lambda m, n: pl.BlockSpec((m, n), lambda b: (0, 0))

    cost2 = pl.CostEstimate(
        flops=4 * B * W * W * E + 2 * B * W * E * E + 4 * B * W * E * Hm + 16 * B * W * E,
        transcendentals=B * H * W * W + B * W * Hm + 2 * B * W,
        bytes_accessed=(3 * B * W * E * 2 + 2 * B * W * E * 4
                        + (E * E + 2 * E * Hm) * 2 + (3 * E + Hm) * 4),
    )
    out = pl.pallas_call(
        functools.partial(attn_mlp_kernel, nb_head=H, head_dim=hd),
        grid=(B,),
        in_specs=[head_blk, head_blk, head_blk, xrow,
                  mat2(E, E), vec2(E), vec2(E), vec2(E),
                  mat2(E, Hm), vec2(Hm), mat2(Hm, E), vec2(E)],
        out_specs=xrow,
        out_shape=jax.ShapeDtypeStruct((B, W, E), f32),
        compiler_params=pltpu.CompilerParams(
            dimension_semantics=("parallel",),
            vmem_limit_bytes=vmem_limit),
        cost_estimate=cost2,
    )(qh, kh, vh, x, prep["wo"], prep["bo"], prep["ln2_g"], prep["ln2_b"],
      prep["w1"], prep["b1"], prep["w2"], prep["b2"])

    return out


# ---------------------------------------------------------------------------
# Pure-JAX f32 reference (mirrors the PyTorch forward exactly) for validation.
# ---------------------------------------------------------------------------
def encoder_block_ref(x, params):
    B, W, E = x.shape
    H = params["nb_head"]
    hd = E // H

    def ln(v, g, b):
        mu = jnp.mean(v, axis=-1, keepdims=True)
        var = jnp.mean((v - mu) ** 2, axis=-1, keepdims=True)
        return (v - mu) / jnp.sqrt(var + LN_EPS) * g[0] + b[0]

    xn = ln(x, params["ln1_g"], params["ln1_b"])
    q = (xn @ params["wq"]).reshape(B, H, W, hd)
    k = (xn @ params["wk"]).reshape(B, H, W, hd)
    v = (xn @ params["wv"]).reshape(B, H, W, hd)
    dots = jnp.einsum("bhqd,bhkd->bhqk", q, k) / (hd ** 0.5)
    attn = jax.nn.softmax(dots, axis=-1)
    o = jnp.einsum("bhqk,bhkd->bhqd", attn, v)
    o = o.transpose(0, 2, 1, 3).reshape(B, W, E)
    o = o @ params["wo"] + params["bo"][0]
    y = o + x
    yn = ln(y, params["ln2_g"], params["ln2_b"])
    h = yn @ params["w1"] + params["b1"][0]
    h = 0.5 * h * (1.0 + jax.lax.erf(h / jnp.sqrt(2.0)))
    return h @ params["w2"] + params["b2"][0] + y


def make_params(key, embed_dim, nb_head, hidden_dim):
    ks = jax.random.split(key, 12)
    s = 0.05
    f32 = jnp.float32
    return {
        "nb_head": nb_head,
        "ln1_g": (1.0 + 0.1 * jax.random.normal(ks[0], (1, embed_dim), f32)),
        "ln1_b": 0.1 * jax.random.normal(ks[1], (1, embed_dim), f32),
        "wq": s * jax.random.normal(ks[2], (embed_dim, embed_dim), f32),
        "wk": s * jax.random.normal(ks[3], (embed_dim, embed_dim), f32),
        "wv": s * jax.random.normal(ks[4], (embed_dim, embed_dim), f32),
        "wo": s * jax.random.normal(ks[5], (embed_dim, embed_dim), f32),
        "bo": 0.1 * jax.random.normal(ks[6], (1, embed_dim), f32),
        "ln2_g": (1.0 + 0.1 * jax.random.normal(ks[7], (1, embed_dim), f32)),
        "ln2_b": 0.1 * jax.random.normal(ks[8], (1, embed_dim), f32),
        "w1": s * jax.random.normal(ks[9], (embed_dim, hidden_dim), f32),
        "b1": 0.1 * jax.random.normal(ks[10], (1, hidden_dim), f32),
        "w2": s * jax.random.normal(ks[11], (hidden_dim, embed_dim), f32),
        "b2": jnp.zeros((1, embed_dim), f32),
    }


if __name__ == "__main__":
    # Small shapes consistent with the module: x is (batch, window_len, embed_dim).
    B, W, E, H, HIDDEN = 2, 8, 32, 4, 64

    key = jax.random.PRNGKey(0)
    kx, kp = jax.random.split(key)
    x = jax.random.normal(kx, (B, W, E), jnp.float32)
    params = make_params(kp, E, H, HIDDEN)

    prep = jax.block_until_ready(prepare_params(params))   # one-time weight prep
    out = jax.block_until_ready(encoder_block(x, prep, nb_head=H))
    ref = encoder_block_ref(x, params)

    assert out.shape == (B, W, E)
    # bf16 matmul inputs (f32 accumulation) vs the pure-f32 reference: loosen tolerance.
    assert jnp.allclose(out, ref, atol=2e-2, rtol=2e-2), \
        float(jnp.max(jnp.abs(out - ref)))

    print("KERNEL_OK")
</pallas_src>

<mosaic_0001>
module attributes {stable_mosaic.version = 11 : i64} {
  func.func @attn_mlp_kernel(%arg0: i32, %arg1: memref<1x4x8x8xbf16, #tpu.memory_space<vmem>>, %arg2: memref<1x4x8x8xbf16, #tpu.memory_space<vmem>>, %arg3: memref<1x4x8x8xbf16, #tpu.memory_space<vmem>>, %arg4: memref<1x8x32xf32, #tpu.memory_space<vmem>>, %arg5: memref<32x32xbf16, #tpu.memory_space<vmem>>, %arg6: memref<1x32xf32, #tpu.memory_space<vmem>>, %arg7: memref<1x32xf32, #tpu.memory_space<vmem>>, %arg8: memref<1x32xf32, #tpu.memory_space<vmem>>, %arg9: memref<32x64xbf16, #tpu.memory_space<vmem>>, %arg10: memref<1x64xf32, #tpu.memory_space<vmem>>, %arg11: memref<64x32xbf16, #tpu.memory_space<vmem>>, %arg12: memref<1x32xf32, #tpu.memory_space<vmem>>, %arg13: memref<1x8x32xf32, #tpu.memory_space<vmem>>) attributes {dimension_semantics = [#tpu.dimension_semantics<parallel>], iteration_bounds = array<i64: 2>, scalar_prefetch = 0 : i64, scratch_operands = 0 : i64, tpu.core_type = #tpu.core_type<tc>, window_params = [{transform_indices = @transform_0, window_bounds = array<i64: 1, 4, 8, 8>}, {transform_indices = @transform_1, window_bounds = array<i64: 1, 4, 8, 8>}, {transform_indices = @transform_2, window_bounds = array<i64: 1, 4, 8, 8>}, {transform_indices = @transform_3, window_bounds = array<i64: 1, 8, 32>}, {pipeline_mode = #tpu.pipeline_mode<synchronous>, transform_indices = @transform_4, window_bounds = array<i64: 32, 32>}, {pipeline_mode = #tpu.pipeline_mode<synchronous>, transform_indices = @transform_5, window_bounds = array<i64: 1, 32>}, {pipeline_mode = #tpu.pipeline_mode<synchronous>, transform_indices = @transform_6, window_bounds = array<i64: 1, 32>}, {pipeline_mode = #tpu.pipeline_mode<synchronous>, transform_indices = @transform_7, window_bounds = array<i64: 1, 32>}, {pipeline_mode = #tpu.pipeline_mode<synchronous>, transform_indices = @transform_8, window_bounds = array<i64: 32, 64>}, {pipeline_mode = #tpu.pipeline_mode<synchronous>, transform_indices = @transform_9, window_bounds = array<i64: 1, 64>}, {pipeline_mode = #tpu.pipeline_mode<synchronous>, transform_indices = @transform_10, window_bounds = array<i64: 64, 32>}, {pipeline_mode = #tpu.pipeline_mode<synchronous>, transform_indices = @transform_11, window_bounds = array<i64: 1, 32>}, {transform_indices = @transform_12, window_bounds = array<i64: 1, 8, 32>}]} {
    %c0 = arith.constant 0 : index
    %c0_0 = arith.constant 0 : index
    %c0_1 = arith.constant 0 : index
    %0 = vector.load %arg4[%c0, %c0_0, %c0_1] : memref<1x8x32xf32, #tpu.memory_space<vmem>>, vector<1x8x32xf32>
    %1 = vector.shape_cast %0 : vector<1x8x32xf32> to vector<8x32xf32>
    %c0_2 = arith.constant 0 : index
    %c0_3 = arith.constant 0 : index
    %2 = vector.load %arg6[%c0_2, %c0_3] : memref<1x32xf32, #tpu.memory_space<vmem>>, vector<1x32xf32>
    %3 = vector.shape_cast %2 : vector<1x32xf32> to vector<32xf32>
    %4 = vector.shape_cast %3 : vector<32xf32> to vector<1x32xf32>
    %5 = vector.broadcast %4 : vector<1x32xf32> to vector<8x32xf32>
    %6 = arith.addf %1, %5 : vector<8x32xf32>
    %c0_4 = arith.constant 0 : index
    %c0_5 = arith.constant 0 : index
    %c0_6 = arith.constant 0 : index
    %c0_7 = arith.constant 0 : index
    %7 = vector.load %arg1[%c0_4, %c0_5, %c0_6, %c0_7] : memref<1x4x8x8xbf16, #tpu.memory_space<vmem>>, vector<1x1x8x8xbf16>
    %8 = vector.shape_cast %7 : vector<1x1x8x8xbf16> to vector<8x8xbf16>
    %c0_8 = arith.constant 0 : index
    %c0_9 = arith.constant 0 : index
    %c0_10 = arith.constant 0 : index
    %c0_11 = arith.constant 0 : index
    %9 = vector.load %arg2[%c0_8, %c0_9, %c0_10, %c0_11] : memref<1x4x8x8xbf16, #tpu.memory_space<vmem>>, vector<1x1x8x8xbf16>
    %10 = vector.shape_cast %9 : vector<1x1x8x8xbf16> to vector<8x8xbf16>
    %c0_12 = arith.constant 0 : index
    %c0_13 = arith.constant 0 : index
    %c0_14 = arith.constant 0 : index
    %c0_15 = arith.constant 0 : index
    %11 = vector.load %arg3[%c0_12, %c0_13, %c0_14, %c0_15] : memref<1x4x8x8xbf16, #tpu.memory_space<vmem>>, vector<1x1x8x8xbf16>
    %12 = vector.shape_cast %11 : vector<1x1x8x8xbf16> to vector<8x8xbf16>
    %cst = arith.constant dense<0.000000e+00> : vector<8x8xf32>
    %13 = tpu.matmul %8, %10, %cst {dimension_numbers = #tpu.dot_dimension_numbers<[1], [1], [0], [0], [0, 0, 1, 0], [], []>} : vector<8x8xbf16>, vector<8x8xbf16>, vector<8x8xf32> -> vector<8x8xf32>
    %cst_16 = arith.constant dense<0xFF800000> : vector<8xf32>
    %14 = vector.multi_reduction <maximumf>, %13, %cst_16 [1] : vector<8x8xf32> to vector<8xf32>
    %15 = vector.shape_cast %14 : vector<8xf32> to vector<8x1xf32>
    %16 = vector.broadcast %15 : vector<8x1xf32> to vector<8x8xf32>
    %17 = arith.subf %13, %16 : vector<8x8xf32>
    %18 = math.exp %17 : vector<8x8xf32>
    %cst_17 = arith.constant dense<0.000000e+00> : vector<8xf32>
    %19 = vector.multi_reduction <add>, %18, %cst_17 [1] : vector<8x8xf32> to vector<8xf32>
    %20 = vector.shape_cast %19 : vector<8xf32> to vector<8x1xf32>
    %21 = tpu.reciprocal %20 {approx = true} : vector<8x1xf32> -> vector<8x1xf32>
    %22 = vector.broadcast %21 : vector<8x1xf32> to vector<8x8xf32>
    %23 = arith.mulf %18, %22 : vector<8x8xf32>
    %24 = arith.truncf %23 : vector<8x8xf32> to vector<8x8xbf16>
    %cst_18 = arith.constant dense<0.000000e+00> : vector<8x8xf32>
    %25 = tpu.matmul %24, %12, %cst_18 {dimension_numbers = #tpu.dot_dimension_numbers<[1], [0], [0], [1], [0, 0, 1, 1], [], []>} : vector<8x8xbf16>, vector<8x8xbf16>, vector<8x8xf32> -> vector<8x8xf32>
    %26 = arith.truncf %25 : vector<8x8xf32> to vector<8x8xbf16>
    %c0_19 = arith.constant 0 : index
    %c0_20 = arith.constant 0 : index
    %27 = vector.load %arg5[%c0_19, %c0_20] : memref<32x32xbf16, #tpu.memory_space<vmem>>, vector<8x32xbf16>
    %cst_21 = arith.constant dense<0.000000e+00> : vector<8x32xf32>
    %28 = tpu.matmul %26, %27, %cst_21 {dimension_numbers = #tpu.dot_dimension_numbers<[1], [0], [0], [1], [0, 0, 1, 1], [], []>} : vector<8x8xbf16>, vector<8x32xbf16>, vector<8x32xf32> -> vector<8x32xf32>
    %29 = arith.addf %6, %28 : vector<8x32xf32>
    %c0_22 = arith.constant 0 : index
    %c1 = arith.constant 1 : index
    %c0_23 = arith.constant 0 : index
    %c0_24 = arith.constant 0 : index
    %30 = vector.load %arg1[%c0_22, %c1, %c0_23, %c0_24] : memref<1x4x8x8xbf16, #tpu.memory_space<vmem>>, vector<1x1x8x8xbf16>
    %31 = vector.shape_cast %30 : vector<1x1x8x8xbf16> to vector<8x8xbf16>
    %c0_25 = arith.constant 0 : index
    %c1_26 = arith.constant 1 : index
    %c0_27 = arith.constant 0 : index
    %c0_28 = arith.constant 0 : index
    %32 = vector.load %arg2[%c0_25, %c1_26, %c0_27, %c0_28] : memref<1x4x8x8xbf16, #tpu.memory_space<vmem>>, vector<1x1x8x8xbf16>
    %33 = vector.shape_cast %32 : vector<1x1x8x8xbf16> to vector<8x8xbf16>
    %c0_29 = arith.constant 0 : index
    %c1_30 = arith.constant 1 : index
    %c0_31 = arith.constant 0 : index
    %c0_32 = arith.constant 0 : index
    %34 = vector.load %arg3[%c0_29, %c1_30, %c0_31, %c0_32] : memref<1x4x8x8xbf16, #tpu.memory_space<vmem>>, vector<1x1x8x8xbf16>
    %35 = vector.shape_cast %34 : vector<1x1x8x8xbf16> to vector<8x8xbf16>
    %cst_33 = arith.constant dense<0.000000e+00> : vector<8x8xf32>
    %36 = tpu.matmul %31, %33, %cst_33 {dimension_numbers = #tpu.dot_dimension_numbers<[1], [1], [0], [0], [0, 0, 1, 0], [], []>} : vector<8x8xbf16>, vector<8x8xbf16>, vector<8x8xf32> -> vector<8x8xf32>
    %cst_34 = arith.constant dense<0xFF800000> : vector<8xf32>
    %37 = vector.multi_reduction <maximumf>, %36, %cst_34 [1] : vector<8x8xf32> to vector<8xf32>
    %38 = vector.shape_cast %37 : vector<8xf32> to vector<8x1xf32>
    %39 = vector.broadcast %38 : vector<8x1xf32> to vector<8x8xf32>
    %40 = arith.subf %36, %39 : vector<8x8xf32>
    %41 = math.exp %40 : vector<8x8xf32>
    %cst_35 = arith.constant dense<0.000000e+00> : vector<8xf32>
    %42 = vector.multi_reduction <add>, %41, %cst_35 [1] : vector<8x8xf32> to vector<8xf32>
    %43 = vector.shape_cast %42 : vector<8xf32> to vector<8x1xf32>
    %44 = tpu.reciprocal %43 {approx = true} : vector<8x1xf32> -> vector<8x1xf32>
    %45 = vector.broadcast %44 : vector<8x1xf32> to vector<8x8xf32>
    %46 = arith.mulf %41, %45 : vector<8x8xf32>
    %47 = arith.truncf %46 : vector<8x8xf32> to vector<8x8xbf16>
    %cst_36 = arith.constant dense<0.000000e+00> : vector<8x8xf32>
    %48 = tpu.matmul %47, %35, %cst_36 {dimension_numbers = #tpu.dot_dimension_numbers<[1], [0], [0], [1], [0, 0, 1, 1], [], []>} : vector<8x8xbf16>, vector<8x8xbf16>, vector<8x8xf32> -> vector<8x8xf32>
    %49 = arith.truncf %48 : vector<8x8xf32> to vector<8x8xbf16>
    %c8 = arith.constant 8 : index
    %c0_37 = arith.constant 0 : index
    %50 = vector.load %arg5[%c8, %c0_37] : memref<32x32xbf16, #tpu.memory_space<vmem>>, vector<8x32xbf16>
    %cst_38 = arith.constant dense<0.000000e+00> : vector<8x32xf32>
    %51 = tpu.matmul %49, %50, %cst_38 {dimension_numbers = #tpu.dot_dimension_numbers<[1], [0], [0], [1], [0, 0, 1, 1], [], []>} : vector<8x8xbf16>, vector<8x32xbf16>, vector<8x32xf32> -> vector<8x32xf32>
    %52 = arith.addf %29, %51 : vector<8x32xf32>
    %c0_39 = arith.constant 0 : index
    %c2 = arith.constant 2 : index
    %c0_40 = arith.constant 0 : index
    %c0_41 = arith.constant 0 : index
    %53 = vector.load %arg1[%c0_39, %c2, %c0_40, %c0_41] : memref<1x4x8x8xbf16, #tpu.memory_space<vmem>>, vector<1x1x8x8xbf16>
    %54 = vector.shape_cast %53 : vector<1x1x8x8xbf16> to vector<8x8xbf16>
    %c0_42 = arith.constant 0 : index
    %c2_43 = arith.constant 2 : index
    %c0_44 = arith.constant 0 : index
    %c0_45 = arith.constant 0 : index
    %55 = vector.load %arg2[%c0_42, %c2_43, %c0_44, %c0_45] : memref<1x4x8x8xbf16, #tpu.memory_space<vmem>>, vector<1x1x8x8xbf16>
    %56 = vector.shape_cast %55 : vector<1x1x8x8xbf16> to vector<8x8xbf16>
    %c0_46 = arith.constant 0 : index
    %c2_47 = arith.constant 2 : index
    %c0_48 = arith.constant 0 : index
    %c0_49 = arith.constant 0 : index
    %57 = vector.load %arg3[%c0_46, %c2_47, %c0_48, %c0_49] : memref<1x4x8x8xbf16, #tpu.memory_space<vmem>>, vector<1x1x8x8xbf16>
    %58 = vector.shape_cast %57 : vector<1x1x8x8xbf16> to vector<8x8xbf16>
    %cst_50 = arith.constant dense<0.000000e+00> : vector<8x8xf32>
    %59 = tpu.matmul %54, %56, %cst_50 {dimension_numbers = #tpu.dot_dimension_numbers<[1], [1], [0], [0], [0, 0, 1, 0], [], []>} : vector<8x8xbf16>, vector<8x8xbf16>, vector<8x8xf32> -> vector<8x8xf32>
    %cst_51 = arith.constant dense<0xFF800000> : vector<8xf32>
    %60 = vector.multi_reduction <maximumf>, %59, %cst_51 [1] : vector<8x8xf32> to vector<8xf32>
    %61 = vector.shape_cast %60 : vector<8xf32> to vector<8x1xf32>
    %62 = vector.broadcast %61 : vector<8x1xf32> to vector<8x8xf32>
    %63 = arith.subf %59, %62 : vector<8x8xf32>
    %64 = math.exp %63 : vector<8x8xf32>
    %cst_52 = arith.constant dense<0.000000e+00> : vector<8xf32>
    %65 = vector.multi_reduction <add>, %64, %cst_52 [1] : vector<8x8xf32> to vector<8xf32>
    %66 = vector.shape_cast %65 : vector<8xf32> to vector<8x1xf32>
    %67 = tpu.reciprocal %66 {approx = true} : vector<8x1xf32> -> vector<8x1xf32>
    %68 = vector.broadcast %67 : vector<8x1xf32> to vector<8x8xf32>
    %69 = arith.mulf %64, %68 : vector<8x8xf32>
    %70 = arith.truncf %69 : vector<8x8xf32> to vector<8x8xbf16>
    %cst_53 = arith.constant dense<0.000000e+00> : vector<8x8xf32>
    %71 = tpu.matmul %70, %58, %cst_53 {dimension_numbers = #tpu.dot_dimension_numbers<[1], [0], [0], [1], [0, 0, 1, 1], [], []>} : vector<8x8xbf16>, vector<8x8xbf16>, vector<8x8xf32> -> vector<8x8xf32>
    %72 = arith.truncf %71 : vector<8x8xf32> to vector<8x8xbf16>
    %c16 = arith.constant 16 : index
    %c0_54 = arith.constant 0 : index
    %73 = vector.load %arg5[%c16, %c0_54] : memref<32x32xbf16, #tpu.memory_space<vmem>>, vector<8x32xbf16>
    %cst_55 = arith.constant dense<0.000000e+00> : vector<8x32xf32>
    %74 = tpu.matmul %72, %73, %cst_55 {dimension_numbers = #tpu.dot_dimension_numbers<[1], [0], [0], [1], [0, 0, 1, 1], [], []>} : vector<8x8xbf16>, vector<8x32xbf16>, vector<8x32xf32> -> vector<8x32xf32>
    %75 = arith.addf %52, %74 : vector<8x32xf32>
    %c0_56 = arith.constant 0 : index
    %c3 = arith.constant 3 : index
    %c0_57 = arith.constant 0 : index
    %c0_58 = arith.constant 0 : index
    %76 = vector.load %arg1[%c0_56, %c3, %c0_57, %c0_58] : memref<1x4x8x8xbf16, #tpu.memory_space<vmem>>, vector<1x1x8x8xbf16>
    %77 = vector.shape_cast %76 : vector<1x1x8x8xbf16> to vector<8x8xbf16>
    %c0_59 = arith.constant 0 : index
    %c3_60 = arith.constant 3 : index
    %c0_61 = arith.constant 0 : index
    %c0_62 = arith.constant 0 : index
    %78 = vector.load %arg2[%c0_59, %c3_60, %c0_61, %c0_62] : memref<1x4x8x8xbf16, #tpu.memory_space<vmem>>, vector<1x1x8x8xbf16>
    %79 = vector.shape_cast %78 : vector<1x1x8x8xbf16> to vector<8x8xbf16>
    %c0_63 = arith.constant 0 : index
    %c3_64 = arith.constant 3 : index
    %c0_65 = arith.constant 0 : index
    %c0_66 = arith.constant 0 : index
    %80 = vector.load %arg3[%c0_63, %c3_64, %c0_65, %c0_66] : memref<1x4x8x8xbf16, #tpu.memory_space<vmem>>, vector<1x1x8x8xbf16>
    %81 = vector.shape_cast %80 : vector<1x1x8x8xbf16> to vector<8x8xbf16>
    %cst_67 = arith.constant dense<0.000000e+00> : vector<8x8xf32>
    %82 = tpu.matmul %77, %79, %cst_67 {dimension_numbers = #tpu.dot_dimension_numbers<[1], [1], [0], [0], [0, 0, 1, 0], [], []>} : vector<8x8xbf16>, vector<8x8xbf16>, vector<8x8xf32> -> vector<8x8xf32>
    %cst_68 = arith.constant dense<0xFF800000> : vector<8xf32>
    %83 = vector.multi_reduction <maximumf>, %82, %cst_68 [1] : vector<8x8xf32> to vector<8xf32>
    %84 = vector.shape_cast %83 : vector<8xf32> to vector<8x1xf32>
    %85 = vector.broadcast %84 : vector<8x1xf32> to vector<8x8xf32>
    %86 = arith.subf %82, %85 : vector<8x8xf32>
    %87 = math.exp %86 : vector<8x8xf32>
    %cst_69 = arith.constant dense<0.000000e+00> : vector<8xf32>
    %88 = vector.multi_reduction <add>, %87, %cst_69 [1] : vector<8x8xf32> to vector<8xf32>
    %89 = vector.shape_cast %88 : vector<8xf32> to vector<8x1xf32>
    %90 = tpu.reciprocal %89 {approx = true} : vector<8x1xf32> -> vector<8x1xf32>
    %91 = vector.broadcast %90 : vector<8x1xf32> to vector<8x8xf32>
    %92 = arith.mulf %87, %91 : vector<8x8xf32>
    %93 = arith.truncf %92 : vector<8x8xf32> to vector<8x8xbf16>
    %cst_70 = arith.constant dense<0.000000e+00> : vector<8x8xf32>
    %94 = tpu.matmul %93, %81, %cst_70 {dimension_numbers = #tpu.dot_dimension_numbers<[1], [0], [0], [1], [0, 0, 1, 1], [], []>} : vector<8x8xbf16>, vector<8x8xbf16>, vector<8x8xf32> -> vector<8x8xf32>
    %95 = arith.truncf %94 : vector<8x8xf32> to vector<8x8xbf16>
    %c24 = arith.constant 24 : index
    %c0_71 = arith.constant 0 : index
    %96 = vector.load %arg5[%c24, %c0_71] : memref<32x32xbf16, #tpu.memory_space<vmem>>, vector<8x32xbf16>
    %cst_72 = arith.constant dense<0.000000e+00> : vector<8x32xf32>
    %97 = tpu.matmul %95, %96, %cst_72 {dimension_numbers = #tpu.dot_dimension_numbers<[1], [0], [0], [1], [0, 0, 1, 1], [], []>} : vector<8x8xbf16>, vector<8x32xbf16>, vector<8x32xf32> -> vector<8x32xf32>
    %98 = arith.addf %75, %97 : vector<8x32xf32>
    %c0_73 = arith.constant 0 : index
    %c0_74 = arith.constant 0 : index
    %99 = vector.load %arg7[%c0_73, %c0_74] : memref<1x32xf32, #tpu.memory_space<vmem>>, vector<1x32xf32>
    %100 = vector.shape_cast %99 : vector<1x32xf32> to vector<32xf32>
    %c0_75 = arith.constant 0 : index
    %c0_76 = arith.constant 0 : index
    %101 = vector.load %arg8[%c0_75, %c0_76] : memref<1x32xf32, #tpu.memory_space<vmem>>, vector<1x32xf32>
    %102 = vector.shape_cast %101 : vector<1x32xf32> to vector<32xf32>
    %cst_77 = arith.constant dense<0.000000e+00> : vector<8xf32>
    %103 = vector.multi_reduction <add>, %98, %cst_77 [1] : vector<8x32xf32> to vector<8xf32>
    %104 = vector.shape_cast %103 : vector<8xf32> to vector<8x1xf32>
    %cst_78 = arith.constant 3.200000e+01 : f32
    %105 = vector.broadcast %cst_78 : f32 to vector<8x1xf32>
    %106 = arith.divf %104, %105 : vector<8x1xf32>
    %107 = vector.broadcast %106 : vector<8x1xf32> to vector<8x32xf32>
    %108 = arith.subf %98, %107 : vector<8x32xf32>
    %109 = arith.mulf %108, %108 : vector<8x32xf32>
    %cst_79 = arith.constant dense<0.000000e+00> : vector<8xf32>
    %110 = vector.multi_reduction <add>, %109, %cst_79 [1] : vector<8x32xf32> to vector<8xf32>
    %111 = vector.shape_cast %110 : vector<8xf32> to vector<8x1xf32>
    %cst_80 = arith.constant 3.200000e+01 : f32
    %112 = vector.broadcast %cst_80 : f32 to vector<8x1xf32>
    %113 = arith.divf %111, %112 : vector<8x1xf32>
    %114 = vector.broadcast %106 : vector<8x1xf32> to vector<8x32xf32>
    %115 = arith.subf %98, %114 : vector<8x32xf32>
    %cst_81 = arith.constant 9.99999974E-6 : f32
    %116 = vector.broadcast %cst_81 : f32 to vector<8x1xf32>
    %117 = arith.addf %113, %116 : vector<8x1xf32>
    %118 = math.rsqrt %117 : vector<8x1xf32>
    %119 = vector.broadcast %118 : vector<8x1xf32> to vector<8x32xf32>
    %120 = arith.mulf %115, %119 : vector<8x32xf32>
    %121 = vector.shape_cast %100 : vector<32xf32> to vector<1x32xf32>
    %122 = vector.broadcast %121 : vector<1x32xf32> to vector<8x32xf32>
    %123 = arith.mulf %120, %122 : vector<8x32xf32>
    %124 = vector.shape_cast %102 : vector<32xf32> to vector<1x32xf32>
    %125 = vector.broadcast %124 : vector<1x32xf32> to vector<8x32xf32>
    %126 = arith.addf %123, %125 : vector<8x32xf32>
    %127 = arith.truncf %126 : vector<8x32xf32> to vector<8x32xbf16>
    %c0_82 = arith.constant 0 : index
    %c0_83 = arith.constant 0 : index
    %128 = vector.load %arg9[%c0_82, %c0_83] : memref<32x64xbf16, #tpu.memory_space<vmem>>, vector<32x64xbf16>
    %cst_84 = arith.constant dense<0.000000e+00> : vector<8x64xf32>
    %129 = tpu.matmul %127, %128, %cst_84 {dimension_numbers = #tpu.dot_dimension_numbers<[1], [0], [0], [1], [0, 0, 1, 1], [], []>} : vector<8x32xbf16>, vector<32x64xbf16>, vector<8x64xf32> -> vector<8x64xf32>
    %c0_85 = arith.constant 0 : index
    %c0_86 = arith.constant 0 : index
    %130 = vector.load %arg10[%c0_85, %c0_86] : memref<1x64xf32, #tpu.memory_space<vmem>>, vector<1x64xf32>
    %131 = vector.shape_cast %130 : vector<1x64xf32> to vector<64xf32>
    %132 = vector.shape_cast %131 : vector<64xf32> to vector<1x64xf32>
    %133 = vector.broadcast %132 : vector<1x64xf32> to vector<8x64xf32>
    %134 = arith.addf %129, %133 : vector<8x64xf32>
    %cst_87 = arith.constant 5.000000e-01 : f32
    %135 = vector.broadcast %cst_87 : f32 to vector<8x64xf32>
    %136 = arith.mulf %135, %134 : vector<8x64xf32>
    %cst_88 = arith.constant 0.707106769 : f32
    %137 = vector.broadcast %cst_88 : f32 to vector<8x64xf32>
    %138 = arith.mulf %134, %137 : vector<8x64xf32>
    %139 = math.erf %138 : vector<8x64xf32>
    %cst_89 = arith.constant 1.000000e+00 : f32
    %140 = vector.broadcast %cst_89 : f32 to vector<8x64xf32>
    %141 = arith.addf %140, %139 : vector<8x64xf32>
    %142 = arith.mulf %136, %141 : vector<8x64xf32>
    %143 = arith.truncf %142 : vector<8x64xf32> to vector<8x64xbf16>
    %c0_90 = arith.constant 0 : index
    %c0_91 = arith.constant 0 : index
    %144 = vector.load %arg11[%c0_90, %c0_91] : memref<64x32xbf16, #tpu.memory_space<vmem>>, vector<64x32xbf16>
    %cst_92 = arith.constant dense<0.000000e+00> : vector<8x32xf32>
    %145 = tpu.matmul %143, %144, %cst_92 {dimension_numbers = #tpu.dot_dimension_numbers<[1], [0], [0], [1], [0, 0, 1, 1], [], []>} : vector<8x64xbf16>, vector<64x32xbf16>, vector<8x32xf32> -> vector<8x32xf32>
    %c0_93 = arith.constant 0 : index
    %c0_94 = arith.constant 0 : index
    %146 = vector.load %arg12[%c0_93, %c0_94] : memref<1x32xf32, #tpu.memory_space<vmem>>, vector<1x32xf32>
    %147 = vector.shape_cast %146 : vector<1x32xf32> to vector<32xf32>
    %148 = vector.shape_cast %147 : vector<32xf32> to vector<1x32xf32>
    %149 = vector.broadcast %148 : vector<1x32xf32> to vector<8x32xf32>
    %150 = arith.addf %145, %149 : vector<8x32xf32>
    %151 = arith.addf %150, %98 : vector<8x32xf32>
    %c0_95 = arith.constant 0 : index
    %c0_96 = arith.constant 0 : index
    %c0_97 = arith.constant 0 : index
    %152 = vector.load %arg13[%c0_95, %c0_96, %c0_97] : memref<1x8x32xf32, #tpu.memory_space<vmem>>, vector<1x8x32xf32>
    %153 = vector.shape_cast %152 : vector<1x8x32xf32> to vector<8x32xf32>
    %154 = vector.shape_cast %151 : vector<8x32xf32> to vector<1x8x32xf32>
    tpu.vector_store %arg13[%c0_95, %c0_96, %c0_97], %154 {strides = array<i32>} : memref<1x8x32xf32, #tpu.memory_space<vmem>>, vector<1x8x32xf32>,
    return
  }
  func.func @transform_0(%arg0: i32) -> (i32, i32, i32, i32) {
    %c0_i32 = arith.constant 0 : i32
    %c0_i32_0 = arith.constant 0 : i32
    %c0_i32_1 = arith.constant 0 : i32
    %c0_i32_2 = arith.constant 0 : i32
    return %arg0, %c0_i32, %c0_i32_0, %c0_i32_1 : i32, i32, i32, i32
  }
  func.func @transform_1(%arg0: i32) -> (i32, i32, i32, i32) {
    %c0_i32 = arith.constant 0 : i32
    %c0_i32_0 = arith.constant 0 : i32
    %c0_i32_1 = arith.constant 0 : i32
    %c0_i32_2 = arith.constant 0 : i32
    return %arg0, %c0_i32, %c0_i32_0, %c0_i32_1 : i32, i32, i32, i32
  }
  func.func @transform_2(%arg0: i32) -> (i32, i32, i32, i32) {
    %c0_i32 = arith.constant 0 : i32
    %c0_i32_0 = arith.constant 0 : i32
    %c0_i32_1 = arith.constant 0 : i32
    %c0_i32_2 = arith.constant 0 : i32
    return %arg0, %c0_i32, %c0_i32_0, %c0_i32_1 : i32, i32, i32, i32
  }
  func.func @transform_3(%arg0: i32) -> (i32, i32, i32) {
    %c0_i32 = arith.constant 0 : i32
    %c0_i32_0 = arith.constant 0 : i32
    %c0_i32_1 = arith.constant 0 : i32
    return %arg0, %c0_i32, %c0_i32_0 : i32, i32, i32
  }
  func.func @transform_4(%arg0: i32) -> (i32, i32) {
    %c0_i32 = arith.constant 0 : i32
    %c0_i32_0 = arith.constant 0 : i32
    %c0_i32_1 = arith.constant 0 : i32
    return %c0_i32, %c0_i32_0 : i32, i32
  }
  func.func @transform_5(%arg0: i32) -> (i32, i32) {
    %c0_i32 = arith.constant 0 : i32
    %c0_i32_0 = arith.constant 0 : i32
    %c0_i32_1 = arith.constant 0 : i32
    return %c0_i32, %c0_i32_0 : i32, i32
  }
  func.func @transform_6(%arg0: i32) -> (i32, i32) {
    %c0_i32 = arith.constant 0 : i32
    %c0_i32_0 = arith.constant 0 : i32
    %c0_i32_1 = arith.constant 0 : i32
    return %c0_i32, %c0_i32_0 : i32, i32
  }
  func.func @transform_7(%arg0: i32) -> (i32, i32) {
    %c0_i32 = arith.constant 0 : i32
    %c0_i32_0 = arith.constant 0 : i32
    %c0_i32_1 = arith.constant 0 : i32
    return %c0_i32, %c0_i32_0 : i32, i32
  }
  func.func @transform_8(%arg0: i32) -> (i32, i32) {
    %c0_i32 = arith.constant 0 : i32
    %c0_i32_0 = arith.constant 0 : i32
    %c0_i32_1 = arith.constant 0 : i32
    return %c0_i32, %c0_i32_0 : i32, i32
  }
  func.func @transform_9(%arg0: i32) -> (i32, i32) {
    %c0_i32 = arith.constant 0 : i32
    %c0_i32_0 = arith.constant 0 : i32
    %c0_i32_1 = arith.constant 0 : i32
    return %c0_i32, %c0_i32_0 : i32, i32
  }
  func.func @transform_10(%arg0: i32) -> (i32, i32) {
    %c0_i32 = arith.constant 0 : i32
    %c0_i32_0 = arith.constant 0 : i32
    %c0_i32_1 = arith.constant 0 : i32
    return %c0_i32, %c0_i32_0 : i32, i32
  }
  func.func @transform_11(%arg0: i32) -> (i32, i32) {
    %c0_i32 = arith.constant 0 : i32
    %c0_i32_0 = arith.constant 0 : i32
    %c0_i32_1 = arith.constant 0 : i32
    return %c0_i32, %c0_i32_0 : i32, i32
  }
  func.func @transform_12(%arg0: i32) -> (i32, i32, i32) {
    %c0_i32 = arith.constant 0 : i32
    %c0_i32_0 = arith.constant 0 : i32
    %c0_i32_1 = arith.constant 0 : i32
    return %arg0, %c0_i32, %c0_i32_0 : i32, i32, i32
  }
}

module attributes {stable_mosaic.version = 11 : i64} {
  func.func @ln_qkv_kernel(%arg0: i32, %arg1: memref<16x32xf32, #tpu.memory_space<vmem>>, %arg2: memref<1x32xf32, #tpu.memory_space<vmem>>, %arg3: memref<1x32xf32, #tpu.memory_space<vmem>>, %arg4: memref<32x96xbf16, #tpu.memory_space<vmem>>, %arg5: memref<16x96xbf16, #tpu.memory_space<vmem>>) attributes {dimension_semantics = [#tpu.dimension_semantics<parallel>], iteration_bounds = array<i64: 1>, scalar_prefetch = 0 : i64, scratch_operands = 0 : i64, tpu.core_type = #tpu.core_type<tc>, window_params = [{transform_indices = @transform_0, window_bounds = array<i64: 16, 32>}, {pipeline_mode = #tpu.pipeline_mode<synchronous>, transform_indices = @transform_1, window_bounds = array<i64: 1, 32>}, {pipeline_mode = #tpu.pipeline_mode<synchronous>, transform_indices = @transform_2, window_bounds = array<i64: 1, 32>}, {pipeline_mode = #tpu.pipeline_mode<synchronous>, transform_indices = @transform_3, window_bounds = array<i64: 32, 96>}, {transform_indices = @transform_4, window_bounds = array<i64: 16, 96>}]} {
    %c0 = arith.constant 0 : index
    %c0_0 = arith.constant 0 : index
    %0 = vector.load %arg1[%c0, %c0_0] : memref<16x32xf32, #tpu.memory_space<vmem>>, vector<16x32xf32>
    %c0_1 = arith.constant 0 : index
    %c0_2 = arith.constant 0 : index
    %1 = vector.load %arg2[%c0_1, %c0_2] : memref<1x32xf32, #tpu.memory_space<vmem>>, vector<1x32xf32>
    %2 = vector.shape_cast %1 : vector<1x32xf32> to vector<32xf32>
    %c0_3 = arith.constant 0 : index
    %c0_4 = arith.constant 0 : index
    %3 = vector.load %arg3[%c0_3, %c0_4] : memref<1x32xf32, #tpu.memory_space<vmem>>, vector<1x32xf32>
    %4 = vector.shape_cast %3 : vector<1x32xf32> to vector<32xf32>
    %cst = arith.constant dense<0.000000e+00> : vector<16xf32>
    %5 = vector.multi_reduction <add>, %0, %cst [1] : vector<16x32xf32> to vector<16xf32>
    %6 = vector.shape_cast %5 : vector<16xf32> to vector<16x1xf32>
    %cst_5 = arith.constant 3.200000e+01 : f32
    %7 = vector.broadcast %cst_5 : f32 to vector<16x1xf32>
    %8 = arith.divf %6, %7 : vector<16x1xf32>
    %9 = vector.broadcast %8 : vector<16x1xf32> to vector<16x32xf32>
    %10 = arith.subf %0, %9 : vector<16x32xf32>
    %11 = arith.mulf %10, %10 : vector<16x32xf32>
    %cst_6 = arith.constant dense<0.000000e+00> : vector<16xf32>
    %12 = vector.multi_reduction <add>, %11, %cst_6 [1] : vector<16x32xf32> to vector<16xf32>
    %13 = vector.shape_cast %12 : vector<16xf32> to vector<16x1xf32>
    %cst_7 = arith.constant 3.200000e+01 : f32
    %14 = vector.broadcast %cst_7 : f32 to vector<16x1xf32>
    %15 = arith.divf %13, %14 : vector<16x1xf32>
    %16 = vector.broadcast %8 : vector<16x1xf32> to vector<16x32xf32>
    %17 = arith.subf %0, %16 : vector<16x32xf32>
    %cst_8 = arith.constant 9.99999974E-6 : f32
    %18 = vector.broadcast %cst_8 : f32 to vector<16x1xf32>
    %19 = arith.addf %15, %18 : vector<16x1xf32>
    %20 = math.rsqrt %19 : vector<16x1xf32>
    %21 = vector.broadcast %20 : vector<16x1xf32> to vector<16x32xf32>
    %22 = arith.mulf %17, %21 : vector<16x32xf32>
    %23 = vector.shape_cast %2 : vector<32xf32> to vector<1x32xf32>
    %24 = vector.broadcast %23 : vector<1x32xf32> to vector<16x32xf32>
    %25 = arith.mulf %22, %24 : vector<16x32xf32>
    %26 = vector.shape_cast %4 : vector<32xf32> to vector<1x32xf32>
    %27 = vector.broadcast %26 : vector<1x32xf32> to vector<16x32xf32>
    %28 = arith.addf %25, %27 : vector<16x32xf32>
    %29 = arith.truncf %28 : vector<16x32xf32> to vector<16x32xbf16>
    %c0_9 = arith.constant 0 : index
    %c0_10 = arith.constant 0 : index
    %30 = vector.load %arg4[%c0_9, %c0_10] : memref<32x96xbf16, #tpu.memory_space<vmem>>, vector<32x96xbf16>
    %cst_11 = arith.constant dense<0.000000e+00> : vector<16x96xf32>
    %31 = tpu.matmul %29, %30, %cst_11 {dimension_numbers = #tpu.dot_dimension_numbers<[1], [0], [0], [1], [0, 0, 1, 1], [], []>} : vector<16x32xbf16>, vector<32x96xbf16>, vector<16x96xf32> -> vector<16x96xf32>
    %32 = arith.truncf %31 : vector<16x96xf32> to vector<16x96xbf16>
    %c0_12 = arith.constant 0 : index
    %c0_13 = arith.constant 0 : index
    %33 = vector.load %arg5[%c0_12, %c0_13] : memref<16x96xbf16, #tpu.memory_space<vmem>>, vector<16x96xbf16>
    tpu.vector_store %arg5[%c0_12, %c0_13], %32 {strides = array<i32>} : memref<16x96xbf16, #tpu.memory_space<vmem>>, vector<16x96xbf16>,
    return
  }
  func.func @transform_0(%arg0: i32) -> (i32, i32) {
    %c0_i32 = arith.constant 0 : i32
    %c0_i32_0 = arith.constant 0 : i32
    return %arg0, %c0_i32 : i32, i32
  }
  func.func @transform_1(%arg0: i32) -> (i32, i32) {
    %c0_i32 = arith.constant 0 : i32
    %c0_i32_0 = arith.constant 0 : i32
    %c0_i32_1 = arith.constant 0 : i32
    return %c0_i32, %c0_i32_0 : i32, i32
  }
  func.func @transform_2(%arg0: i32) -> (i32, i32) {
    %c0_i32 = arith.constant 0 : i32
    %c0_i32_0 = arith.constant 0 : i32
    %c0_i32_1 = arith.constant 0 : i32
    return %c0_i32, %c0_i32_0 : i32, i32
  }
  func.func @transform_3(%arg0: i32) -> (i32, i32) {
    %c0_i32 = arith.constant 0 : i32
    %c0_i32_0 = arith.constant 0 : i32
    %c0_i32_1 = arith.constant 0 : i32
    return %c0_i32, %c0_i32_0 : i32, i32
  }
  func.func @transform_4(%arg0: i32) -> (i32, i32) {
    %c0_i32 = arith.constant 0 : i32
    %c0_i32_0 = arith.constant 0 : i32
    return %arg0, %c0_i32 : i32, i32
  }
}

</mosaic_0001>

<llo_original>
// kernel: encoder_block.2
$region0: #{encoder_block.2}
  #allocation0 [shape = 'u32[]', space=smem, size = 0x4, offset = 0x4, fixed_abs, tag = 'smem constant byte address 0x4 - core index']
  #allocation1 [shape = 'u32[144,128]{1,0:T(1,128)}', space=vmem, size = 0x12000, scoped, tag = 'internal scratch']
  %s0 = inlined_call_operand.vmem [shape: f32[16,32], index: 0, kind: input, shape index: {}]
  %s1 = inlined_call_operand.vmem [shape: f32[1,32], index: 1, kind: input, shape index: {}]
  %s2 = inlined_call_operand.vmem [shape: f32[1,32], index: 2, kind: input, shape index: {}]
  %s3 = inlined_call_operand.vmem [shape: bf16[32,96], index: 3, kind: input, shape index: {}]
  %s4 = inlined_call_operand.vmem [shape: bf16[16,96], index: 4, kind: output, shape index: {}]
  %s5 = sld [smem:[#allocation0]]
  $region26: #{encoder_block.2} parent=0
    _
  %s7 = ssub.s32 1, %s5
  %s8 = scalar_select 0, %s7, %s5
  // Predicated region
  $region2: #{encoder_block.2} parent=0 // pred_check
    _
  $region3: #{encoder_block.2} parent=0 // pred_check_branch
    %10 = sbr.rel (0) target = $region5
  $region4: #{encoder_block.2} parent=0 // pred_region
    _
  $region5: #{encoder_block.2} parent=0 // pred_fallthru
    _
  // Predicated region
  $region6: #{encoder_block.2} parent=0 // pred_check
    _
  $region7: #{encoder_block.2} parent=0 // pred_check_branch
    %12 = sbr.rel (0) target = $region9
  $region8: #{encoder_block.2} parent=0 // pred_region
    _
  $region9: #{encoder_block.2} parent=0 // pred_fallthru
    _
  // Predicated region
  $region10: #{encoder_block.2} parent=0 // pred_check
    _
  $region11: #{encoder_block.2} parent=0 // pred_check_branch
    %14 = sbr.rel (0) target = $region13
  $region12: #{encoder_block.2} parent=0 // pred_region
    _
  $region13: #{encoder_block.2} parent=0 // pred_fallthru
    _
  // Predicated region
  $region14: #{encoder_block.2} parent=0 // pred_check
    _
  $region15: #{encoder_block.2} parent=0 // pred_check_branch
    %16 = sbr.rel (0) target = $region17
  $region16: #{encoder_block.2} parent=0 // pred_region
    _
  $region17: #{encoder_block.2} parent=0 // pred_fallthru
    _
  %v18 = vld [vmem:[%s0] sm:$0xff]
  %v19 = vld [vmem:[%s0 + $0x8] sm:$0xff]
  %v20 = vld [vmem:[%s1] sm:$0x1]
  %v21 = vld [vmem:[%s2] sm:$0x1]
  %vm22 = vcmask 261120
  %v23 = vsel %vm22, %v18, 0.0
  %24 = vadd.xlane.f32.xlu0 %v23
  %v25 = vpop.xlane.xlu0 %24
  %v26 = vsel %vm22, %v19, 0.0
  %27 = vadd.xlane.f32.xlu0 %v26
  %v28 = vpop.xlane.xlu0 %27
  %v29 = vrcp.pop 32.0
  %v30 = vmul.f32 %v25, %v29
  %v31 = vmul.f32 %v28, %v29
  %v32 = vsub.f32 %v18, %v30
  %v33 = vsub.f32 %v19, %v31
  %v34 = vmul.f32 %v32, %v32
  %v35 = vmul.f32 %v33, %v33
  %v36 = vsel %vm22, %v34, 0.0
  %37 = vadd.xlane.f32.xlu0 %v36
  %v38 = vpop.xlane.xlu0 %37
  %v39 = vsel %vm22, %v35, 0.0
  %40 = vadd.xlane.f32.xlu0 %v39
  %v41 = vpop.xlane.xlu0 %40
  %v42 = vmul.f32 %v38, %v29
  %v43 = vmul.f32 %v41, %v29
  %v44 = vadd.f32 %v42, 1e-05
  %v45 = vadd.f32 %v43, 1e-05
  %v46 = vrsqrt.pop %v44
  %v47 = vrsqrt.pop %v45
  %v48 = vmul.f32 %v32, %v46
  %v49 = vmul.f32 %v33, %v47
  %v51 = vlaneseq
  %v52 = vshrl.u32 %v51, 7
  %v53 = vsub.s32 0, %v52
  %v54 = vrot.slane %v20, %v53
  %v56 = vmul.f32 %v48, %v54
  %v57 = vmul.f32 %v49, %v54
  %v59 = vlaneseq
  %v60 = vshrl.u32 %v59, 7
  %v61 = vsub.s32 0, %v60
  %v62 = vrot.slane %v21, %v61
  %v64 = vadd.f32 %v56, %v62
  %v65 = vadd.f32 %v57, %v62
  %v66 = vpack.c.bf16 %v65, %v64
  %v67 = vld [vmem:[%s3] sm:$0xf]
  %v68 = vld [vmem:[%s3 + $0x4] sm:$0xf]
  %v69 = vld [vmem:[%s3 + $0x8] sm:$0xf]
  %v70 = vld [vmem:[%s3 + $0xc] sm:$0xf]
  %v75 = vunpack.c.l.b16 %v67
  %v76 = vunpack.c.l.b16 %v68
  %v77 = vunpack.c.l.b16 %v69
  %v78 = vunpack.c.l.b16 %v70
  %v79 = vpack.c.b16 %v76, %v75
  %v80 = vpack.c.b16 %v78, %v77
  %v84 = vsel %vm22, %v66, 0
  %86 = vmatprep.subr.bf16.mxu0 0
  %87 = vmatpush1.bf16.msra.mxu0 %v79
  %88 = vmatprep.subr.bf16.mxu0 0
  %89 = vmatpush1.bf16.msra.mxu0 %v80
  %90 = vmatprep.subr.bf16.mxu0 0
  %91 = vmatpush1.bf16.msra.mxu0 0
  %92 = vmatprep.subr.bf16.mxu0 0
  %93 = vmatpush1.bf16.msra.mxu0 0
  %94 = vmatprep.subr.bf16.mxu0 0
  %95 = vmatpush1.bf16.msra.mxu0 0
  %96 = vmatprep.subr.bf16.mxu0 0
  %97 = vmatpush1.bf16.msra.mxu0 0
  %98 = vmatprep.subr.bf16.mxu0 0
  %99 = vmatpush1.bf16.msra.mxu0 0
  %100 = vmatprep.subr.bf16.mxu0 0
  %101 = vmatpush1.bf16.msra.mxu0 0
  %102 = vmatprep.subr.bf16.mxu0 0
  %103 = vmatpush1.bf16.msra.mxu0 0
  %104 = vmatprep.subr.bf16.mxu0 0
  %105 = vmatpush1.bf16.msra.mxu0 0
  %106 = vmatprep.subr.bf16.mxu0 0
  %107 = vmatpush1.bf16.msra.mxu0 0
  %108 = vmatprep.subr.bf16.mxu0 0
  %109 = vmatpush1.bf16.msra.mxu0 0
  %110 = vmatprep.subr.bf16.mxu0 0
  %111 = vmatpush1.bf16.msra.mxu0 0
  %112 = vmatprep.subr.bf16.mxu0 0
  %113 = vmatpush1.bf16.msra.mxu0 0
  %114 = vmatprep.subr.bf16.mxu0 0
  %115 = vmatpush1.bf16.msra.mxu0 0
  %116 = vmatprep.subr.bf16.mxu0 0
  %117 = vmatpush1.bf16.msra.mxu0 0
  %118 = vmatprep.mubr.bf16.mxu0 0
  %119 = vmatmul.mubr.bf16.gmra.mrb[0].mxu0 %v84
  %v120 = vpop.f32.mrb[0].mxu0
  %v121 = vadd.f32 0.0, %v120
  %v122 = vpop.f32.mrb[0].mxu0
  %v123 = vpop.f32.mrb[0].mxu0
  %v124 = vadd.f32 0.0, %v123
  %v125 = vpop.f32.mrb[0].mxu0
  %126 = vdwg.mxu0
  %v127 = vpack.c.bf16 %v124, %v121
  %v129 = vunpack.c.l.b16 %v127
  %v130 = vunpack.c.h.b16 %v127
  %v131 = vpack.c.b16 %v129, %v129
  %v132 = vpack.c.b16 %v130, %v130
  %vm135 = vcmask 781312
  %136 = vst.msk [vmem:[%s4] sm:$0xf] %vm135, %v131
  %137 = vst.msk [vmem:[%s4 + $0x4] sm:$0xf] %vm135, %v132
  // Predicated region
  $region18: #{encoder_block.2} parent=0 // pred_check
    _
  $region19: #{encoder_block.2} parent=0 // pred_check_branch
    %139 = sbr.rel (0) target = $region21
  $region20: #{encoder_block.2} parent=0 // pred_region
    _
  $region21: #{encoder_block.2} parent=0 // pred_fallthru
    _
  // Predicated region
  $region22: #{encoder_block.2} parent=0 // pred_check
    _
  $region23: #{encoder_block.2} parent=0 // pred_check_branch
    %141 = sbr.rel (0) target = $region25
  $region24: #{encoder_block.2} parent=0 // pred_region
    _
  $region25: #{encoder_block.2} parent=0 // pred_fallthru
    _

// kernel: encoder_block.3
$region0: #{encoder_block.3}
  #allocation0 [shape = 'u32[]', space=smem, size = 0x4, offset = 0x4, fixed_abs, tag = 'smem constant byte address 0x4 - core index']
  #allocation1 [shape = 'u32[144,128]{1,0:T(1,128)}', space=vmem, size = 0x12000, scoped, tag = 'internal scratch']
  %s0 = inlined_call_operand.vmem [shape: bf16[2,4,8,8], index: 0, kind: input, shape index: {}]
  %s1 = inlined_call_operand.vmem [shape: bf16[2,4,8,8], index: 1, kind: input, shape index: {}]
  %s2 = inlined_call_operand.vmem [shape: bf16[2,4,8,8], index: 2, kind: input, shape index: {}]
  %s3 = inlined_call_operand.vmem [shape: f32[2,8,32], index: 3, kind: input, shape index: {}]
  %s4 = inlined_call_operand.vmem [shape: bf16[32,32], index: 4, kind: input, shape index: {}]
  %s5 = inlined_call_operand.vmem [shape: f32[1,32], index: 5, kind: input, shape index: {}]
  %s6 = inlined_call_operand.vmem [shape: f32[1,32], index: 6, kind: input, shape index: {}]
  %s7 = inlined_call_operand.vmem [shape: f32[1,32], index: 7, kind: input, shape index: {}]
  %s8 = inlined_call_operand.vmem [shape: bf16[32,64], index: 8, kind: input, shape index: {}]
  %s9 = inlined_call_operand.vmem [shape: f32[1,64], index: 9, kind: input, shape index: {}]
  %s10 = inlined_call_operand.vmem [shape: bf16[64,32], index: 10, kind: input, shape index: {}]
  %s11 = inlined_call_operand.vmem [shape: f32[1,32], index: 11, kind: input, shape index: {}]
  %s12 = inlined_call_operand.hbm [shape: f32[2,8,32], index: 12, kind: output, shape index: {}]
  %s13 = sld [smem:[#allocation0]]
  $region81: #{encoder_block.3} parent=0
    _
  %s15 = ssub.s32 1, %s13
  %s16 = scalar_select 0, %s15, %s13
  $region1: #{encoder_block.3} parent=0
    #allocation2 [shape = 'u8[8192]{0}', space=vmem, size = 0x2000, scoped, tag = 'output window, operand 0']
    #allocation3 [shape = 's32[2]{0}', space=sflag, size = 0x8, scoped, tag = 'scoped memory for encoder_block.3']
    %17 = vsyncpa [#allocation3], 0
    %s18 = scalar_lea.sflag [#allocation3], 1
    %19 = vsyncpa %s18, 0
    loop: start=0, step=1, limit=4
    $region2: #{encoder_block.3} parent=1 // loop_pre_header
      _
    $region3: #{encoder_block.3} parent=1 // loop_header
      %s21 = sphi 0, %s25
      %p22 = scmp.ge.s32.totalorder %s21, 4
      %s31 = sphi 0, %s33
      %s34 = sphi 0, %s31
      %s35 = sphi 0, %s34
      %s51 = sphi 0, %s35
      %s57 = sphi 0, %s59
      %s60 = sphi 0, %s57
      %s61 = sphi 0, %s60
      %s77 = sphi 0, %s61
      %s83 = sphi 0, %s85
      %s86 = sphi 0, %s83
      %s87 = sphi 0, %s86
      %s103 = sphi 0, %s87
      %s109 = sphi 0, %s111
      %s112 = sphi 0, %s109
      %s113 = sphi 0, %s112
      %s129 = sphi 0, %s113
      %s133 = sphi 0, %s133
      %s135 = sphi 0, %s133
      %s136 = sphi 0, %s135
      %s150 = sphi 0, %s136
      %s154 = sphi 0, %s154
      %s156 = sphi 0, %s154
      %s157 = sphi 0, %s156
      %s171 = sphi 0, %s157
      %s175 = sphi 0, %s175
      %s177 = sphi 0, %s175
      %s178 = sphi 0, %s177
      %s192 = sphi 0, %s178
      %s196 = sphi 0, %s196
      %s198 = sphi 0, %s196
      %s199 = sphi 0, %s198
      %s213 = sphi 0, %s199
      %s217 = sphi 0, %s217
      %s219 = sphi 0, %s217
      %s220 = sphi 0, %s219
      %s234 = sphi 0, %s220
      %s238 = sphi 0, %s238
      %s240 = sphi 0, %s238
      %s241 = sphi 0, %s240
      %s255 = sphi 0, %s241
      %s259 = sphi 0, %s259
      %s261 = sphi 0, %s259
      %s262 = sphi 0, %s261
      %s276 = sphi 0, %s262
      %s280 = sphi 0, %s280
      %s282 = sphi 0, %s280
      %s283 = sphi 0, %s282
      %s297 = sphi 0, %s283
      %s303 = sphi 0, %s305
      %s306 = sphi 0, %s303
      %s307 = sphi 0, %s306
      %s323 = sphi 0, %s307
    $region4: #{encoder_block.3} parent=1 // loop_header_branch
      %24 = sbr.rel (%p22) target = $region8
    $region5: #{encoder_block.3} parent=1 // loop_body
      %s26 = ssub.s32 %s21, 1
      %s27 = ssub.s32 %s21, 2
      %s28 = sadd.s32 %s21, 1
      %s29 = ssub.s32 %s21, %s28
      %p30 = scmp.eq.s32.totalorder %s29, 0
      %s32 = sadd.s32 %s31, 1
      %s33 = scalar_select %p30, %s31, %s32
      %p36 = pneg %p30
      %p37 = scmp.eq.s32.totalorder %s21, 1
      %p38 = por %p36, %p37
      %p39 = scmp.ne.s32.totalorder %s31, %s34
      %p40 = scmp.eq.s32.totalorder %s21, 0
      %p41 = por %p39, %p40
      %p42 = scmp.ne.s32.totalorder %s31, %s34
      %p43 = scmp.eq.s32.totalorder %s26, 1
      %p44 = por %p42, %p43
      %p45 = scmp.ne.s32.totalorder %s34, %s35
      %p46 = scmp.eq.s32.totalorder %s26, 0
      %p47 = por %p45, %p46
      %p48 = scmp.ne.s32.totalorder %s34, %s35
      %p49 = scmp.eq.s32.totalorder %s27, 1
      %p50 = por %p48, %p49
      %p52 = scmp.ne.s32.totalorder %s35, %s51
      %p53 = scmp.eq.s32.totalorder %s27, 0
      %p54 = por %p52, %p53
      %s55 = ssub.s32 %s21, %s28
      %p56 = scmp.eq.s32.totalorder %s55, 0
      %s58 = sadd.s32 %s57, 1
      %s59 = scalar_select %p56, %s57, %s58
      %p62 = pneg %p56
      %p63 = scmp.eq.s32.totalorder %s21, 1
      %p64 = por %p62, %p63
      %p65 = scmp.ne.s32.totalorder %s57, %s60
      %p66 = scmp.eq.s32.totalorder %s21, 0
      %p67 = por %p65, %p66
      %p68 = scmp.ne.s32.totalorder %s57, %s60
      %p69 = scmp.eq.s32.totalorder %s26, 1
      %p70 = por %p68, %p69
      %p71 = scmp.ne.s32.totalorder %s60, %s61
      %p72 = scmp.eq.s32.totalorder %s26, 0
      %p73 = por %p71, %p72
      %p74 = scmp.ne.s32.totalorder %s60, %s61
      %p75 = scmp.eq.s32.totalorder %s27, 1
      %p76 = por %p74, %p75
      %p78 = scmp.ne.s32.totalorder %s61, %s77
      %p79 = scmp.eq.s32.totalorder %s27, 0
      %p80 = por %p78, %p79
      %s81 = ssub.s32 %s21, %s28
      %p82 = scmp.eq.s32.totalorder %s81, 0
      %s84 = sadd.s32 %s83, 1
      %s85 = scalar_select %p82, %s83, %s84
      %p88 = pneg %p82
      %p89 = scmp.eq.s32.totalorder %s21, 1
      %p90 = por %p88, %p89
      %p91 = scmp.ne.s32.totalorder %s83, %s86
      %p92 = scmp.eq.s32.totalorder %s21, 0
      %p93 = por %p91, %p92
      %p94 = scmp.ne.s32.totalorder %s83, %s86
      %p95 = scmp.eq.s32.totalorder %s26, 1
      %p96 = por %p94, %p95
      %p97 = scmp.ne.s32.totalorder %s86, %s87
      %p98 = scmp.eq.s32.totalorder %s26, 0
      %p99 = por %p97, %p98
      %p100 = scmp.ne.s32.totalorder %s86, %s87
      %p101 = scmp.eq.s32.totalorder %s27, 1
      %p102 = por %p100, %p101
      %p104 = scmp.ne.s32.totalorder %s87, %s103
      %p105 = scmp.eq.s32.totalorder %s27, 0
      %p106 = por %p104, %p105
      %s107 = ssub.s32 %s21, %s28
      %p108 = scmp.eq.s32.totalorder %s107, 0
      %s110 = sadd.s32 %s109, 1
      %s111 = scalar_select %p108, %s109, %s110
      %p114 = pneg %p108
      %p115 = scmp.eq.s32.totalorder %s21, 1
      %p116 = por %p114, %p115
      %p117 = scmp.ne.s32.totalorder %s109, %s112
      %p118 = scmp.eq.s32.totalorder %s21, 0
      %p119 = por %p117, %p118
      %p120 = scmp.ne.s32.totalorder %s109, %s112
      %p121 = scmp.eq.s32.totalorder %s26, 1
      %p122 = por %p120, %p121
      %p123 = scmp.ne.s32.totalorder %s112, %s113
      %p124 = scmp.eq.s32.totalorder %s26, 0
      %p125 = por %p123, %p124
      %p126 = scmp.ne.s32.totalorder %s112, %s113
      %p127 = scmp.eq.s32.totalorder %s27, 1
      %p128 = por %p126, %p127
      %p130 = scmp.ne.s32.totalorder %s113, %s129
      %p131 = scmp.eq.s32.totalorder %s27, 0
      %p132 = por %p130, %p131
      %s134 = sadd.s32 %s133, 1
      %p137 = scmp.eq.s32.totalorder %s21, 1
      %p138 = scmp.ne.s32.totalorder %s133, %s135
      %p139 = scmp.eq.s32.totalorder %s21, 0
      %p140 = por %p138, %p139
      %p141 = scmp.ne.s32.totalorder %s133, %s135
      %p142 = scmp.eq.s32.totalorder %s26, 1
      %p143 = por %p141, %p142
      %p144 = scmp.ne.s32.totalorder %s135, %s136
      %p145 = scmp.eq.s32.totalorder %s26, 0
      %p146 = por %p144, %p145
      %p147 = scmp.ne.s32.totalorder %s135, %s136
      %p148 = scmp.eq.s32.totalorder %s27, 1
      %p149 = por %p147, %p148
      %p151 = scmp.ne.s32.totalorder %s136, %s150
      %p152 = scmp.eq.s32.totalorder %s27, 0
      %p153 = por %p151, %p152
      %s155 = sadd.s32 %s154, 1
      %p158 = scmp.eq.s32.totalorder %s21, 1
      %p159 = scmp.ne.s32.totalorder %s154, %s156
      %p160 = scmp.eq.s32.totalorder %s21, 0
      %p161 = por %p159, %p160
      %p162 = scmp.ne.s32.totalorder %s154, %s156
      %p163 = scmp.eq.s32.totalorder %s26, 1
      %p164 = por %p162, %p163
      %p165 = scmp.ne.s32.totalorder %s156, %s157
      %p166 = scmp.eq.s32.totalorder %s26, 0
      %p167 = por %p165, %p166
      %p168 = scmp.ne.s32.totalorder %s156, %s157
      %p169 = scmp.eq.s32.totalorder %s27, 1
      %p170 = por %p168, %p169
      %p172 = scmp.ne.s32.totalorder %s157, %s171
      %p173 = scmp.eq.s32.totalorder %s27, 0
      %p174 = por %p172, %p173
      %s176 = sadd.s32 %s175, 1
      %p179 = scmp.eq.s32.totalorder %s21, 1
      %p180 = scmp.ne.s32.totalorder %s175, %s177
      %p181 = scmp.eq.s32.totalorder %s21, 0
      %p182 = por %p180, %p181
      %p183 = scmp.ne.s32.totalorder %s175, %s177
      %p184 = scmp.eq.s32.totalorder %s26, 1
      %p185 = por %p183, %p184
      %p186 = scmp.ne.s32.totalorder %s177, %s178
      %p187 = scmp.eq.s32.totalorder %s26, 0
      %p188 = por %p186, %p187
      %p189 = scmp.ne.s32.totalorder %s177, %s178
      %p190 = scmp.eq.s32.totalorder %s27, 1
      %p191 = por %p189, %p190
      %p193 = scmp.ne.s32.totalorder %s178, %s192
      %p194 = scmp.eq.s32.totalorder %s27, 0
      %p195 = por %p193, %p194
      %s197 = sadd.s32 %s196, 1
      %p200 = scmp.eq.s32.totalorder %s21, 1
      %p201 = scmp.ne.s32.totalorder %s196, %s198
      %p202 = scmp.eq.s32.totalorder %s21, 0
      %p203 = por %p201, %p202
      %p204 = scmp.ne.s32.totalorder %s196, %s198
      %p205 = scmp.eq.s32.totalorder %s26, 1
      %p206 = por %p204, %p205
      %p207 = scmp.ne.s32.totalorder %s198, %s199
      %p208 = scmp.eq.s32.totalorder %s26, 0
      %p209 = por %p207, %p208
      %p210 = scmp.ne.s32.totalorder %s198, %s199
      %p211 = scmp.eq.s32.totalorder %s27, 1
      %p212 = por %p210, %p211
      %p214 = scmp.ne.s32.totalorder %s199, %s213
      %p215 = scmp.eq.s32.totalorder %s27, 0
      %p216 = por %p214, %p215
      %s218 = sadd.s32 %s217, 1
      %p221 = scmp.eq.s32.totalorder %s21, 1
      %p222 = scmp.ne.s32.totalorder %s217, %s219
      %p223 = scmp.eq.s32.totalorder %s21, 0
      %p224 = por %p222, %p223
      %p225 = scmp.ne.s32.totalorder %s217, %s219
      %p226 = scmp.eq.s32.totalorder %s26, 1
      %p227 = por %p225, %p226
      %p228 = scmp.ne.s32.totalorder %s219, %s220
      %p229 = scmp.eq.s32.totalorder %s26, 0
      %p230 = por %p228, %p229
      %p231 = scmp.ne.s32.totalorder %s219, %s220
      %p232 = scmp.eq.s32.totalorder %s27, 1
      %p233 = por %p231, %p232
      %p235 = scmp.ne.s32.totalorder %s220, %s234
      %p236 = scmp.eq.s32.totalorder %s27, 0
      %p237 = por %p235, %p236
      %s239 = sadd.s32 %s238, 1
      %p242 = scmp.eq.s32.totalorder %s21, 1
      %p243 = scmp.ne.s32.totalorder %s238, %s240
      %p244 = scmp.eq.s32.totalorder %s21, 0
      %p245 = por %p243, %p244
      %p246 = scmp.ne.s32.totalorder %s238, %s240
      %p247 = scmp.eq.s32.totalorder %s26, 1
      %p248 = por %p246, %p247
      %p249 = scmp.ne.s32.totalorder %s240, %s241
      %p250 = scmp.eq.s32.totalorder %s26, 0
      %p251 = por %p249, %p250
      %p252 = scmp.ne.s32.totalorder %s240, %s241
      %p253 = scmp.eq.s32.totalorder %s27, 1
      %p254 = por %p252, %p253
      %p256 = scmp.ne.s32.totalorder %s241, %s255
      %p257 = scmp.eq.s32.totalorder %s27, 0
      %p258 = por %p256, %p257
      %s260 = sadd.s32 %s259, 1
      %p263 = scmp.eq.s32.totalorder %s21, 1
      %p264 = scmp.ne.s32.totalorder %s259, %s261
      %p265 = scmp.eq.s32.totalorder %s21, 0
      %p266 = por %p264, %p265
      %p267 = scmp.ne.s32.totalorder %s259, %s261
      %p268 = scmp.eq.s32.totalorder %s26, 1
      %p269 = por %p267, %p268
      %p270 = scmp.ne.s32.totalorder %s261, %s262
      %p271 = scmp.eq.s32.totalorder %s26, 0
      %p272 = por %p270, %p271
      %p273 = scmp.ne.s32.totalorder %s261, %s262
      %p274 = scmp.eq.s32.totalorder %s27, 1
      %p275 = por %p273, %p274
      %p277 = scmp.ne.s32.totalorder %s262, %s276
      %p278 = scmp.eq.s32.totalorder %s27, 0
      %p279 = por %p277, %p278
      %s281 = sadd.s32 %s280, 1
      %p284 = scmp.eq.s32.totalorder %s21, 1
      %p285 = scmp.ne.s32.totalorder %s280, %s282
      %p286 = scmp.eq.s32.totalorder %s21, 0
      %p287 = por %p285, %p286
      %p288 = scmp.ne.s32.totalorder %s280, %s282
      %p289 = scmp.eq.s32.totalorder %s26, 1
      %p290 = por %p288, %p289
      %p291 = scmp.ne.s32.totalorder %s282, %s283
      %p292 = scmp.eq.s32.totalorder %s26, 0
      %p293 = por %p291, %p292
      %p294 = scmp.ne.s32.totalorder %s282, %s283
      %p295 = scmp.eq.s32.totalorder %s27, 1
      %p296 = por %p294, %p295
      %p298 = scmp.ne.s32.totalorder %s283, %s297
      %p299 = scmp.eq.s32.totalorder %s27, 0
      %p300 = por %p298, %p299
      %s301 = ssub.s32 %s21, %s28
      %p302 = scmp.eq.s32.totalorder %s301, 0
      %s304 = sadd.s32 %s303, 1
      %s305 = scalar_select %p302, %s303, %s304
      %p308 = pneg %p302
      %p309 = scmp.eq.s32.totalorder %s21, 1
      %p310 = por %p308, %p309
      %p311 = scmp.ne.s32.totalorder %s303, %s306
      %p312 = scmp.eq.s32.totalorder %s21, 0
      %p313 = por %p311, %p312
      %p314 = scmp.ne.s32.totalorder %s303, %s306
      %p315 = scmp.eq.s32.totalorder %s26, 1
      %p316 = por %p314, %p315
      %p317 = scmp.ne.s32.totalorder %s306, %s307
      %p318 = scmp.eq.s32.totalorder %s26, 0
      %p319 = por %p317, %p318
      %p320 = scmp.ne.s32.totalorder %s306, %s307
      %p321 = scmp.eq.s32.totalorder %s27, 1
      %p322 = por %p320, %p321
      %p324 = scmp.ne.s32.totalorder %s307, %s323
      %p325 = scmp.eq.s32.totalorder %s27, 0
      %p326 = por %p324, %p325
      %p327 = scmp.le.s32.totalorder 1, %s21
      %p328 = scmp.lt.s32.totalorder %s21, 3
      %p329 = pnand %p327, %p328
      %p330 = pneg %p329
      // Predicated region
      $region9: #{encoder_block.3} parent=5 // pred_check
        _
      $region10: #{encoder_block.3} parent=5 // pred_check_branch
        %332 = sbr.rel (%p329) target = $region12
      $region11: #{encoder_block.3} parent=5 // pred_region
        %s333 = ssub.s32 %s21, 1
        // Predicated region
        $region13: #{encoder_block.3} parent=11 // pred_check
          %p334 = pneg %p146
        $region14: #{encoder_block.3} parent=11 // pred_check_branch
          %336 = sbr.rel (%p334) target = $region16
        $region15: #{encoder_block.3} parent=11 // pred_region
          _
        $region16: #{encoder_block.3} parent=11 // pred_fallthru
          _
        // Predicated region
        $region17: #{encoder_block.3} parent=11 // pred_check
          %p337 = pneg %p167
        $region18: #{encoder_block.3} parent=11 // pred_check_branch
          %339 = sbr.rel (%p337) target = $region20
        $region19: #{encoder_block.3} parent=11 // pred_region
          _
        $region20: #{encoder_block.3} parent=11 // pred_fallthru
          _
        // Predicated region
        $region21: #{encoder_block.3} parent=11 // pred_check
          %p340 = pneg %p188
        $region22: #{encoder_block.3} parent=11 // pred_check_branch
          %342 = sbr.rel (%p340) target = $region24
        $region23: #{encoder_block.3} parent=11 // pred_region
          _
        $region24: #{encoder_block.3} parent=11 // pred_fallthru
          _
        // Predicated region
        $region25: #{encoder_block.3} parent=11 // pred_check
          %p343 = pneg %p209
        $region26: #{encoder_block.3} parent=11 // pred_check_branch
          %345 = sbr.rel (%p343) target = $region28
        $region27: #{encoder_block.3} parent=11 // pred_region
          _
        $region28: #{encoder_block.3} parent=11 // pred_fallthru
          _
        // Predicated region
        $region29: #{encoder_block.3} parent=11 // pred_check
          %p346 = pneg %p230
        $region30: #{encoder_block.3} parent=11 // pred_check_branch
          %348 = sbr.rel (%p346) target = $region32
        $region31: #{encoder_block.3} parent=11 // pred_region
          _
        $region32: #{encoder_block.3} parent=11 // pred_fallthru
          _
        // Predicated region
        $region33: #{encoder_block.3} parent=11 // pred_check
          %p349 = pneg %p251
        $region34: #{encoder_block.3} parent=11 // pred_check_branch
          %351 = sbr.rel (%p349) target = $region36
        $region35: #{encoder_block.3} parent=11 // pred_region
          _
        $region36: #{encoder_block.3} parent=11 // pred_fallthru
          _
        // Predicated region
        $region37: #{encoder_block.3} parent=11 // pred_check
          %p352 = pneg %p272
        $region38: #{encoder_block.3} parent=11 // pred_check_branch
          %354 = sbr.rel (%p352) target = $region40
        $region39: #{encoder_block.3} parent=11 // pred_region
          _
        $region40: #{encoder_block.3} parent=11 // pred_fallthru
          _
        // Predicated region
        $region41: #{encoder_block.3} parent=11 // pred_check
          %p355 = pneg %p293
        $region42: #{encoder_block.3} parent=11 // pred_check_branch
          %357 = sbr.rel (%p355) target = $region44
        $region43: #{encoder_block.3} parent=11 // pred_region
          _
        $region44: #{encoder_block.3} parent=11 // pred_fallthru
          _
      $region12: #{encoder_block.3} parent=5 // pred_fallthru
        _
      %p358 = scmp.lt.s32.totalorder %s21, 2
      // Predicated region
      $region45: #{encoder_block.3} parent=5 // pred_check
        %p359 = pneg %p358
      $region46: #{encoder_block.3} parent=5 // pred_check_branch
        %361 = sbr.rel (%p359) target = $region48
      $region47: #{encoder_block.3} parent=5 // pred_region
        // Predicated region
        $region49: #{encoder_block.3} parent=47 // pred_check
          %p362 = pneg %p41
        $region50: #{encoder_block.3} parent=47 // pred_check_branch
          %364 = sbr.rel (%p362) target = $region52
        $region51: #{encoder_block.3} parent=47 // pred_region
          %p365 = scmp.lt.s32.totalorder %s21, 1
          %s366 = scalar_select %p365, %s21, 1
          %s367 = smul.addr %s366, 4
          %s368 = smul.addr %s367, 4
          %s369 = scalar_lea.vmem %s0, %s368
        $region52: #{encoder_block.3} parent=47 // pred_fallthru
          _
        // Predicated region
        $region53: #{encoder_block.3} parent=47 // pred_check
          %p370 = pneg %p67
        $region54: #{encoder_block.3} parent=47 // pred_check_branch
          %372 = sbr.rel (%p370) target = $region56
        $region55: #{encoder_block.3} parent=47 // pred_region
          %p373 = scmp.lt.s32.totalorder %s21, 1
          %s374 = scalar_select %p373, %s21, 1
          %s375 = smul.addr %s374, 4
          %s376 = smul.addr %s375, 4
          %s377 = scalar_lea.vmem %s1, %s376
        $region56: #{encoder_block.3} parent=47 // pred_fallthru
          _
        // Predicated region
        $region57: #{encoder_block.3} parent=47 // pred_check
          %p378 = pneg %p93
        $region58: #{encoder_block.3} parent=47 // pred_check_branch
          %380 = sbr.rel (%p378) target = $region60
        $region59: #{encoder_block.3} parent=47 // pred_region
          %p381 = scmp.lt.s32.totalorder %s21, 1
          %s382 = scalar_select %p381, %s21, 1
          %s383 = smul.addr %s382, 4
          %s384 = smul.addr %s383, 4
          %s385 = scalar_lea.vmem %s2, %s384
        $region60: #{encoder_block.3} parent=47 // pred_fallthru
          _
        // Predicated region
        $region61: #{encoder_block.3} parent=47 // pred_check
          %p386 = pneg %p119
        $region62: #{encoder_block.3} parent=47 // pred_check_branch
          %388 = sbr.rel (%p386) target = $region64
        $region63: #{encoder_block.3} parent=47 // pred_region
          %p389 = scmp.lt.s32.totalorder %s21, 1
          %s390 = scalar_select %p389, %s21, 1
          %s391 = smul.addr %s390, 8
          %s392 = scalar_lea.vmem %s3, %s391
        $region64: #{encoder_block.3} parent=47 // pred_fallthru
          _
      $region48: #{encoder_block.3} parent=5 // pred_fallthru
        _
      %p393 = scmp.le.s32.totalorder 1, %s21
      %p394 = scmp.lt.s32.totalorder %s21, 3
      %p395 = pnand %p393, %p394
      %p396 = pneg %p395
      // Predicated region
      $region65: #{encoder_block.3} parent=5 // pred_check
        _
      $region66: #{encoder_block.3} parent=5 // pred_check_branch
        %398 = sbr.rel (%p395) target = $region68
      $region67: #{encoder_block.3} parent=5 // pred_region
        %s399 = ssub.s32 %s21, 1
        %p400 = scmp.lt.s32.totalorder %s26, 1
        %s401 = scalar_select %p400, %s26, 1
        %s402 = smul.addr %s401, 4
        %s403 = smul.addr %s402, 4
        %s404 = scalar_lea.vmem %s0, %s403
        %p405 = pneg %p47
        %p406 = pneg %p44
        %p407 = scmp.lt.s32.totalorder %s26, 1
        %s408 = scalar_select %p407, %s26, 1
        %s409 = smul.addr %s408, 4
        %s410 = smul.addr %s409, 4
        %s411 = scalar_lea.vmem %s1, %s410
        %p412 = pneg %p73
        %p413 = pneg %p70
        %p414 = scmp.lt.s32.totalorder %s26, 1
        %s415 = scalar_select %p414, %s26, 1
        %s416 = smul.addr %s415, 4
        %s417 = smul.addr %s416, 4
        %s418 = scalar_lea.vmem %s2, %s417
        %p419 = pneg %p99
        %p420 = pneg %p96
        %p421 = scmp.lt.s32.totalorder %s26, 1
        %s422 = scalar_select %p421, %s26, 1
        %s423 = smul.addr %s422, 8
        %s424 = scalar_lea.vmem %s3, %s423
        %p425 = pneg %p125
        %p426 = pneg %p122
        %p427 = pneg %p146
        %p428 = pneg %p143
        %p429 = pneg %p167
        %p430 = pneg %p164
        %p431 = pneg %p188
        %p432 = pneg %p185
        %p433 = pneg %p209
        %p434 = pneg %p206
        %p435 = pneg %p230
        %p436 = pneg %p227
        %p437 = pneg %p251
        %p438 = pneg %p248
        %p439 = pneg %p272
        %p440 = pneg %p269
        %p441 = pneg %p293
        %p442 = pneg %p290
        %p443 = pneg %p319
        %p444 = pneg %p316
        %s445 = sand.u32 %s306, 1
        %s446 = scalar_lea.sflag [#allocation3], %s445
        %s447 = sand.u32 %s306, 1
        %s448 = smul.addr %s447, 8
        %s449 = scalar_lea.vmem [#allocation2], %s448
        %p450 = scmp.lt.s32.totalorder %s26, 1
        %s451 = scalar_select %p450, %s26, 1
        %s452 = smul.addr %s451, 4
        %s453 = smul.addr %s452, 4
        %s454 = scalar_lea.vmem %s0, %s453
        %p455 = scmp.lt.s32.totalorder %s26, 1
        %s456 = scalar_select %p455, %s26, 1
        %s457 = smul.addr %s456, 4
        %s458 = smul.addr %s457, 4
        %s459 = scalar_lea.vmem %s1, %s458
        %p460 = scmp.lt.s32.totalorder %s26, 1
        %s461 = scalar_select %p460, %s26, 1
        %s462 = smul.addr %s461, 4
        %s463 = smul.addr %s462, 4
        %s464 = scalar_lea.vmem %s2, %s463
        %p465 = scmp.lt.s32.totalorder %s26, 1
        %s466 = scalar_select %p465, %s26, 1
        %s467 = smul.addr %s466, 8
        %s468 = scalar_lea.vmem %s3, %s467
        %v470 = vld [vmem:[%s468] sm:$0xff]
        %v471 = vld [vmem:[%s5] sm:$0x1]
        %v473 = vlaneseq
        %v474 = vshrl.u32 %v473, 7
        %v475 = vsub.s32 0, %v474
        %v476 = vrot.slane %v471, %v475
        %v478 = vadd.f32 %v470, %v476
        %v479 = vld [vmem:[%s454] sm:$0xf]
        %v480 = vld [vmem:[%s459] sm:$0xf]
        %v481 = vld [vmem:[%s464] sm:$0xf]
        %vm482 = vcmask 64512
        %v484 = vsel %vm482, %v479, 0
        %v487 = vsel %vm482, %v480, 0
        %489 = vmatprep.subr.bf16.mxu0 0
        %490 = vmatpush1.bf16.xpose.msra.mxu0 %v487
        %491 = vmatprep.subr.bf16.mxu0 0
        %492 = vmatpush1.bf16.xpose.msra.mxu0 0
        %493 = vmatprep.subr.bf16.mxu0 0
        %494 = vmatpush1.bf16.xpose.msra.mxu0 0
        %495 = vmatprep.subr.bf16.mxu0 0
        %496 = vmatpush1.bf16.xpose.msra.mxu0 0
        %497 = vmatprep.subr.bf16.mxu0 0
        %498 = vmatpush1.bf16.xpose.msra.mxu0 0
        %499 = vmatprep.subr.bf16.mxu0 0
        %500 = vmatpush1.bf16.xpose.msra.mxu0 0
        %501 = vmatprep.subr.bf16.mxu0 0
        %502 = vmatpush1.bf16.xpose.msra.mxu0 0
        %503 = vmatprep.subr.bf16.mxu0 0
        %504 = vmatpush1.bf16.xpose.msra.mxu0 0
        %505 = vmatprep.subr.bf16.mxu0 0
        %506 = vmatpush1.bf16.xpose.msra.mxu0 0
        %507 = vmatprep.subr.bf16.mxu0 0
        %508 = vmatpush1.bf16.xpose.msra.mxu0 0
        %509 = vmatprep.subr.bf16.mxu0 0
        %510 = vmatpush1.bf16.xpose.msra.mxu0 0
        %511 = vmatprep.subr.bf16.mxu0 0
        %512 = vmatpush1.bf16.xpose.msra.mxu0 0
        %513 = vmatprep.subr.bf16.mxu0 0
        %514 = vmatpush1.bf16.xpose.msra.mxu0 0
        %515 = vmatprep.subr.bf16.mxu0 0
        %516 = vmatpush1.bf16.xpose.msra.mxu0 0
        %517 = vmatprep.subr.bf16.mxu0 0
        %518 = vmatpush1.bf16.xpose.msra.mxu0 0
        %519 = vmatprep.subr.bf16.mxu0 0
        %520 = vmatpush1.bf16.xpose.msra.mxu0 0
        %521 = vmatprep.mubr.bf16.mxu0 0
        %522 = vmatmul.mubr.bf16.gmra.mrb[0].mxu0 %v484
        %v523 = vpop.f32.mrb[0].mxu0
        %v524 = vadd.f32 0.0, %v523
        %v525 = vpop.f32.mrb[0].mxu0
        %v526 = vpop.f32.mrb[0].mxu0
        %v527 = vpop.f32.mrb[0].mxu0
        %528 = vdwg.mxu0
        %v529 = vsel %vm482, %v524, -inf
        %530 = vmax.xlane.f32.xlu0 %v529
        %v531 = vpop.xlane.xlu0 %530
        %v532 = vsub.f32 %v524, %v531
        %v533 = vmul.f32 %v532, 1.442695
        %v534 = vpow.pop %v533
        %v535 = vsel %vm482, %v534, 0.0
        %536 = vadd.xlane.f32.xlu0 %v535
        %v537 = vpop.xlane.xlu0 %536
        %v538 = vrcp.pop %v537
        %v539 = vmul.f32 %v534, %v538
        %v540 = vpack.c.bf16 %v539, %v539
        %v542 = vsel %vm482, %v540, 0
        %vm544 = vcmask 1043456
        %v546 = vsel %vm544, %v481, 0
        %548 = vmatprep.subr.bf16.mxu0 0
        %549 = vmatpush1.bf16.msra.mxu0 %v546
        %550 = vmatprep.subr.bf16.mxu0 0
        %551 = vmatpush1.bf16.msra.mxu0 0
        %552 = vmatprep.subr.bf16.mxu0 0
        %553 = vmatpush1.bf16.msra.mxu0 0
        %554 = vmatprep.subr.bf16.mxu0 0
        %555 = vmatpush1.bf16.msra.mxu0 0
        %556 = vmatprep.subr.bf16.mxu0 0
        %557 = vmatpush1.bf16.msra.mxu0 0
        %558 = vmatprep.subr.bf16.mxu0 0
        %559 = vmatpush1.bf16.msra.mxu0 0
        %560 = vmatprep.subr.bf16.mxu0 0
        %561 = vmatpush1.bf16.msra.mxu0 0
        %562 = vmatprep.subr.bf16.mxu0 0
        %563 = vmatpush1.bf16.msra.mxu0 0
        %564 = vmatprep.subr.bf16.mxu0 0
        %565 = vmatpush1.bf16.msra.mxu0 0
        %566 = vmatprep.subr.bf16.mxu0 0
        %567 = vmatpush1.bf16.msra.mxu0 0
        %568 = vmatprep.subr.bf16.mxu0 0
        %569 = vmatpush1.bf16.msra.mxu0 0
        %570 = vmatprep.subr.bf16.mxu0 0
        %571 = vmatpush1.bf16.msra.mxu0 0
        %572 = vmatprep.subr.bf16.mxu0 0
        %573 = vmatpush1.bf16.msra.mxu0 0
        %574 = vmatprep.subr.bf16.mxu0 0
        %575 = vmatpush1.bf16.msra.mxu0 0
        %576 = vmatprep.subr.bf16.mxu0 0
        %577 = vmatpush1.bf16.msra.mxu0 0
        %578 = vmatprep.subr.bf16.mxu0 0
        %579 = vmatpush1.bf16.msra.mxu0 0
        %580 = vmatprep.mubr.bf16.mxu0 0
        %581 = vmatmul.mubr.bf16.gmra.mrb[0].mxu0 %v542
        %v582 = vpop.f32.mrb[0].mxu0
        %v583 = vadd.f32 0.0, %v582
        %v584 = vpop.f32.mrb[0].mxu0
        %v585 = vpop.f32.mrb[0].mxu0
        %v586 = vpop.f32.mrb[0].mxu0
        %587 = vdwg.mxu0
        %v588 = vpack.c.bf16 %v583, %v583
        %v589 = vld [vmem:[%s4] sm:$0xf]
        %v591 = vsel %vm482, %v588, 0
        %v594 = vsel %vm544, %v589, 0
        %596 = vmatprep.subr.bf16.mxu0 0
        %597 = vmatpush1.bf16.msra.mxu0 %v594
        %598 = vmatprep.subr.bf16.mxu0 0
        %599 = vmatpush1.bf16.msra.mxu0 0
        %600 = vmatprep.subr.bf16.mxu0 0
        %601 = vmatpush1.bf16.msra.mxu0 0
        %602 = vmatprep.subr.bf16.mxu0 0
        %603 = vmatpush1.bf16.msra.mxu0 0
        %604 = vmatprep.subr.bf16.mxu0 0
        %605 = vmatpush1.bf16.msra.mxu0 0
        %606 = vmatprep.subr.bf16.mxu0 0
        %607 = vmatpush1.bf16.msra.mxu0 0
        %608 = vmatprep.subr.bf16.mxu0 0
        %609 = vmatpush1.bf16.msra.mxu0 0
        %610 = vmatprep.subr.bf16.mxu0 0
        %611 = vmatpush1.bf16.msra.mxu0 0
        %612 = vmatprep.subr.bf16.mxu0 0
        %613 = vmatpush1.bf16.msra.mxu0 0
        %614 = vmatprep.subr.bf16.mxu0 0
        %615 = vmatpush1.bf16.msra.mxu0 0
        %616 = vmatprep.subr.bf16.mxu0 0
        %617 = vmatpush1.bf16.msra.mxu0 0
        %618 = vmatprep.subr.bf16.mxu0 0
        %619 = vmatpush1.bf16.msra.mxu0 0
        %620 = vmatprep.subr.bf16.mxu0 0
        %621 = vmatpush1.bf16.msra.mxu0 0
        %622 = vmatprep.subr.bf16.mxu0 0
        %623 = vmatpush1.bf16.msra.mxu0 0
        %624 = vmatprep.subr.bf16.mxu0 0
        %625 = vmatpush1.bf16.msra.mxu0 0
        %626 = vmatprep.subr.bf16.mxu0 0
        %627 = vmatpush1.bf16.msra.mxu0 0
        %628 = vmatprep.mubr.bf16.mxu0 0
        %629 = vmatmul.mubr.bf16.gmra.mrb[0].mxu0 %v591
        %v630 = vpop.f32.mrb[0].mxu0
        %v631 = vadd.f32 0.0, %v630
        %v632 = vpop.f32.mrb[0].mxu0
        %v633 = vpop.f32.mrb[0].mxu0
        %v634 = vpop.f32.mrb[0].mxu0
        %635 = vdwg.mxu0
        %v636 = vadd.f32 %v478, %v631
        %s637 = scalar_lea.vmem %s454, 4
        %v638 = vld [vmem:[%s637] sm:$0xf]
        %s639 = scalar_lea.vmem %s459, 4
        %v640 = vld [vmem:[%s639] sm:$0xf]
        %s641 = scalar_lea.vmem %s464, 4
        %v642 = vld [vmem:[%s641] sm:$0xf]
        %v644 = vsel %vm482, %v638, 0
        %v647 = vsel %vm482, %v640, 0
        %649 = vmatprep.subr.bf16.mxu0 0
        %650 = vmatpush1.bf16.xpose.msra.mxu0 %v647
        %651 = vmatprep.subr.bf16.mxu0 0
        %652 = vmatpush1.bf16.xpose.msra.mxu0 0
        %653 = vmatprep.subr.bf16.mxu0 0
        %654 = vmatpush1.bf16.xpose.msra.mxu0 0
        %655 = vmatprep.subr.bf16.mxu0 0
        %656 = vmatpush1.bf16.xpose.msra.mxu0 0
        %657 = vmatprep.subr.bf16.mxu0 0
        %658 = vmatpush1.bf16.xpose.msra.mxu0 0
        %659 = vmatprep.subr.bf16.mxu0 0
        %660 = vmatpush1.bf16.xpose.msra.mxu0 0
        %661 = vmatprep.subr.bf16.mxu0 0
        %662 = vmatpush1.bf16.xpose.msra.mxu0 0
        %663 = vmatprep.subr.bf16.mxu0 0
        %664 = vmatpush1.bf16.xpose.msra.mxu0 0
        %665 = vmatprep.subr.bf16.mxu0 0
        %666 = vmatpush1.bf16.xpose.msra.mxu0 0
        %667 = vmatprep.subr.bf16.mxu0 0
        %668 = vmatpush1.bf16.xpose.msra.mxu0 0
        %669 = vmatprep.subr.bf16.mxu0 0
        %670 = vmatpush1.bf16.xpose.msra.mxu0 0
        %671 = vmatprep.subr.bf16.mxu0 0
        %672 = vmatpush1.bf16.xpose.msra.mxu0 0
        %673 = vmatprep.subr.bf16.mxu0 0
        %674 = vmatpush1.bf16.xpose.msra.mxu0 0
        %675 = vmatprep.subr.bf16.mxu0 0
        %676 = vmatpush1.bf16.xpose.msra.mxu0 0
        %677 = vmatprep.subr.bf16.mxu0 0
        %678 = vmatpush1.bf16.xpose.msra.mxu0 0
        %679 = vmatprep.subr.bf16.mxu0 0
        %680 = vmatpush1.bf16.xpose.msra.mxu0 0
        %681 = vmatprep.mubr.bf16.mxu0 0
        %682 = vmatmul.mubr.bf16.gmra.mrb[0].mxu0 %v644
        %v683 = vpop.f32.mrb[0].mxu0
        %v684 = vadd.f32 0.0, %v683
        %v685 = vpop.f32.mrb[0].mxu0
        %v686 = vpop.f32.mrb[0].mxu0
        %v687 = vpop.f32.mrb[0].mxu0
        %688 = vdwg.mxu0
        %v689 = vsel %vm482, %v684, -inf
        %690 = vmax.xlane.f32.xlu0 %v689
        %v691 = vpop.xlane.xlu0 %690
        %v692 = vsub.f32 %v684, %v691
        %v693 = vmul.f32 %v692, 1.442695
        %v694 = vpow.pop %v693
        %v695 = vsel %vm482, %v694, 0.0
        %696 = vadd.xlane.f32.xlu0 %v695
        %v697 = vpop.xlane.xlu0 %696
        %v698 = vrcp.pop %v697
        %v699 = vmul.f32 %v694, %v698
        %v700 = vpack.c.bf16 %v699, %v699
        %v702 = vsel %vm482, %v700, 0
        %v705 = vsel %vm544, %v642, 0
        %707 = vmatprep.subr.bf16.mxu0 0
        %708 = vmatpush1.bf16.msra.mxu0 %v705
        %709 = vmatprep.subr.bf16.mxu0 0
        %710 = vmatpush1.bf16.msra.mxu0 0
        %711 = vmatprep.subr.bf16.mxu0 0
        %712 = vmatpush1.bf16.msra.mxu0 0
        %713 = vmatprep.subr.bf16.mxu0 0
        %714 = vmatpush1.bf16.msra.mxu0 0
        %715 = vmatprep.subr.bf16.mxu0 0
        %716 = vmatpush1.bf16.msra.mxu0 0
        %717 = vmatprep.subr.bf16.mxu0 0
        %718 = vmatpush1.bf16.msra.mxu0 0
        %719 = vmatprep.subr.bf16.mxu0 0
        %720 = vmatpush1.bf16.msra.mxu0 0
        %721 = vmatprep.subr.bf16.mxu0 0
        %722 = vmatpush1.bf16.msra.mxu0 0
        %723 = vmatprep.subr.bf16.mxu0 0
        %724 = vmatpush1.bf16.msra.mxu0 0
        %725 = vmatprep.subr.bf16.mxu0 0
        %726 = vmatpush1.bf16.msra.mxu0 0
        %727 = vmatprep.subr.bf16.mxu0 0
        %728 = vmatpush1.bf16.msra.mxu0 0
        %729 = vmatprep.subr.bf16.mxu0 0
        %730 = vmatpush1.bf16.msra.mxu0 0
        %731 = vmatprep.subr.bf16.mxu0 0
        %732 = vmatpush1.bf16.msra.mxu0 0
        %733 = vmatprep.subr.bf16.mxu0 0
        %734 = vmatpush1.bf16.msra.mxu0 0
        %735 = vmatprep.subr.bf16.mxu0 0
        %736 = vmatpush1.bf16.msra.mxu0 0
        %737 = vmatprep.subr.bf16.mxu0 0
        %738 = vmatpush1.bf16.msra.mxu0 0
        %739 = vmatprep.mubr.bf16.mxu0 0
        %740 = vmatmul.mubr.bf16.gmra.mrb[0].mxu0 %v702
        %v741 = vpop.f32.mrb[0].mxu0
        %v742 = vadd.f32 0.0, %v741
        %v743 = vpop.f32.mrb[0].mxu0
        %v744 = vpop.f32.mrb[0].mxu0
        %v745 = vpop.f32.mrb[0].mxu0
        %746 = vdwg.mxu0
        %v747 = vpack.c.bf16 %v742, %v742
        %v748 = vld [vmem:[%s4 + $0x4] sm:$0xf]
        %v750 = vsel %vm482, %v747, 0
        %v753 = vsel %vm544, %v748, 0
        %755 = vmatprep.subr.bf16.mxu0 0
        %756 = vmatpush1.bf16.msra.mxu0 %v753
        %757 = vmatprep.subr.bf16.mxu0 0
        %758 = vmatpush1.bf16.msra.mxu0 0
        %759 = vmatprep.subr.bf16.mxu0 0
        %760 = vmatpush1.bf16.msra.mxu0 0
        %761 = vmatprep.subr.bf16.mxu0 0
        %762 = vmatpush1.bf16.msra.mxu0 0
        %763 = vmatprep.subr.bf16.mxu0 0
        %764 = vmatpush1.bf16.msra.mxu0 0
        %765 = vmatprep.subr.bf16.mxu0 0
        %766 = vmatpush1.bf16.msra.mxu0 0
        %767 = vmatprep.subr.bf16.mxu0 0
        %768 = vmatpush1.bf16.msra.mxu0 0
        %769 = vmatprep.subr.bf16.mxu0 0
        %770 = vmatpush1.bf16.msra.mxu0 0
        %771 = vmatprep.subr.bf16.mxu0 0
        %772 = vmatpush1.bf16.msra.mxu0 0
        %773 = vmatprep.subr.bf16.mxu0 0
        %774 = vmatpush1.bf16.msra.mxu0 0
        %775 = vmatprep.subr.bf16.mxu0 0
        %776 = vmatpush1.bf16.msra.mxu0 0
        %777 = vmatprep.subr.bf16.mxu0 0
        %778 = vmatpush1.bf16.msra.mxu0 0
        %779 = vmatprep.subr.bf16.mxu0 0
        %780 = vmatpush1.bf16.msra.mxu0 0
        %781 = vmatprep.subr.bf16.mxu0 0
        %782 = vmatpush1.bf16.msra.mxu0 0
        %783 = vmatprep.subr.bf16.mxu0 0
        %784 = vmatpush1.bf16.msra.mxu0 0
        %785 = vmatprep.subr.bf16.mxu0 0
        %786 = vmatpush1.bf16.msra.mxu0 0
        %787 = vmatprep.mubr.bf16.mxu0 0
        %788 = vmatmul.mubr.bf16.gmra.mrb[0].mxu0 %v750
        %v789 = vpop.f32.mrb[0].mxu0
        %v790 = vadd.f32 0.0, %v789
        %v791 = vpop.f32.mrb[0].mxu0
        %v792 = vpop.f32.mrb[0].mxu0
        %v793 = vpop.f32.mrb[0].mxu0
        %794 = vdwg.mxu0
        %v795 = vadd.f32 %v636, %v790
        %s796 = scalar_lea.vmem %s454, 8
        %v797 = vld [vmem:[%s796] sm:$0xf]
        %s798 = scalar_lea.vmem %s459, 8
        %v799 = vld [vmem:[%s798] sm:$0xf]
        %s800 = scalar_lea.vmem %s464, 8
        %v801 = vld [vmem:[%s800] sm:$0xf]
        %v803 = vsel %vm482, %v797, 0
        %v806 = vsel %vm482, %v799, 0
        %808 = vmatprep.subr.bf16.mxu0 0
        %809 = vmatpush1.bf16.xpose.msra.mxu0 %v806
        %810 = vmatprep.subr.bf16.mxu0 0
        %811 = vmatpush1.bf16.xpose.msra.mxu0 0
        %812 = vmatprep.subr.bf16.mxu0 0
        %813 = vmatpush1.bf16.xpose.msra.mxu0 0
        %814 = vmatprep.subr.bf16.mxu0 0
        %815 = vmatpush1.bf16.xpose.msra.mxu0 0
        %816 = vmatprep.subr.bf16.mxu0 0
        %817 = vmatpush1.bf16.xpose.msra.mxu0 0
        %818 = vmatprep.subr.bf16.mxu0 0
        %819 = vmatpush1.bf16.xpose.msra.mxu0 0
        %820 = vmatprep.subr.bf16.mxu0 0
        %821 = vmatpush1.bf16.xpose.msra.mxu0 0
        %822 = vmatprep.subr.bf16.mxu0 0
        %823 = vmatpush1.bf16.xpose.msra.mxu0 0
        %824 = vmatprep.subr.bf16.mxu0 0
        %825 = vmatpush1.bf16.xpose.msra.mxu0 0
        %826 = vmatprep.subr.bf16.mxu0 0
        %827 = vmatpush1.bf16.xpose.msra.mxu0 0
        %828 = vmatprep.subr.bf16.mxu0 0
        %829 = vmatpush1.bf16.xpose.msra.mxu0 0
        %830 = vmatprep.subr.bf16.mxu0 0
        %831 = vmatpush1.bf16.xpose.msra.mxu0 0
        %832 = vmatprep.subr.bf16.mxu0 0
        %833 = vmatpush1.bf16.xpose.msra.mxu0 0
        %834 = vmatprep.subr.bf16.mxu0 0
        %835 = vmatpush1.bf16.xpose.msra.mxu0 0
        %836 = vmatprep.subr.bf16.mxu0 0
        %837 = vmatpush1.bf16.xpose.msra.mxu0 0
        %838 = vmatprep.subr.bf16.mxu0 0
        %839 = vmatpush1.bf16.xpose.msra.mxu0 0
        %840 = vmatprep.mubr.bf16.mxu0 0
        %841 = vmatmul.mubr.bf16.gmra.mrb[0].mxu0 %v803
        %v842 = vpop.f32.mrb[0].mxu0
        %v843 = vadd.f32 0.0, %v842
        %v844 = vpop.f32.mrb[0].mxu0
        %v845 = vpop.f32.mrb[0].mxu0
        %v846 = vpop.f32.mrb[0].mxu0
        %847 = vdwg.mxu0
        %v848 = vsel %vm482, %v843, -inf
        %849 = vmax.xlane.f32.xlu0 %v848
        %v850 = vpop.xlane.xlu0 %849
        %v851 = vsub.f32 %v843, %v850
        %v852 = vmul.f32 %v851, 1.442695
        %v853 = vpow.pop %v852
        %v854 = vsel %vm482, %v853, 0.0
        %855 = vadd.xlane.f32.xlu0 %v854
        %v856 = vpop.xlane.xlu0 %855
        %v857 = vrcp.pop %v856
        %v858 = vmul.f32 %v853, %v857
        %v859 = vpack.c.bf16 %v858, %v858
        %v861 = vsel %vm482, %v859, 0
        %v864 = vsel %vm544, %v801, 0
        %866 = vmatprep.subr.bf16.mxu0 0
        %867 = vmatpush1.bf16.msra.mxu0 %v864
        %868 = vmatprep.subr.bf16.mxu0 0
        %869 = vmatpush1.bf16.msra.mxu0 0
        %870 = vmatprep.subr.bf16.mxu0 0
        %871 = vmatpush1.bf16.msra.mxu0 0
        %872 = vmatprep.subr.bf16.mxu0 0
        %873 = vmatpush1.bf16.msra.mxu0 0
        %874 = vmatprep.subr.bf16.mxu0 0
        %875 = vmatpush1.bf16.msra.mxu0 0
        %876 = vmatprep.subr.bf16.mxu0 0
        %877 = vmatpush1.bf16.msra.mxu0 0
        %878 = vmatprep.subr.bf16.mxu0 0
        %879 = vmatpush1.bf16.msra.mxu0 0
        %880 = vmatprep.subr.bf16.mxu0 0
        %881 = vmatpush1.bf16.msra.mxu0 0
        %882 = vmatprep.subr.bf16.mxu0 0
        %883 = vmatpush1.bf16.msra.mxu0 0
        %884 = vmatprep.subr.bf16.mxu0 0
        %885 = vmatpush1.bf16.msra.mxu0 0
        %886 = vmatprep.subr.bf16.mxu0 0
        %887 = vmatpush1.bf16.msra.mxu0 0
        %888 = vmatprep.subr.bf16.mxu0 0
        %889 = vmatpush1.bf16.msra.mxu0 0
        %890 = vmatprep.subr.bf16.mxu0 0
        %891 = vmatpush1.bf16.msra.mxu0 0
        %892 = vmatprep.subr.bf16.mxu0 0
        %893 = vmatpush1.bf16.msra.mxu0 0
        %894 = vmatprep.subr.bf16.mxu0 0
        %895 = vmatpush1.bf16.msra.mxu0 0
        %896 = vmatprep.subr.bf16.mxu0 0
        %897 = vmatpush1.bf16.msra.mxu0 0
        %898 = vmatprep.mubr.bf16.mxu0 0
        %899 = vmatmul.mubr.bf16.gmra.mrb[0].mxu0 %v861
        %v900 = vpop.f32.mrb[0].mxu0
        %v901 = vadd.f32 0.0, %v900
        %v902 = vpop.f32.mrb[0].mxu0
        %v903 = vpop.f32.mrb[0].mxu0
        %v904 = vpop.f32.mrb[0].mxu0
        %905 = vdwg.mxu0
        %v906 = vpack.c.bf16 %v901, %v901
        %v907 = vld [vmem:[%s4 + $0x8] sm:$0xf]
        %v909 = vsel %vm482, %v906, 0
        %v912 = vsel %vm544, %v907, 0
        %914 = vmatprep.subr.bf16.mxu0 0
        %915 = vmatpush1.bf16.msra.mxu0 %v912
        %916 = vmatprep.subr.bf16.mxu0 0
        %917 = vmatpush1.bf16.msra.mxu0 0
        %918 = vmatprep.subr.bf16.mxu0 0
        %919 = vmatpush1.bf16.msra.mxu0 0
        %920 = vmatprep.subr.bf16.mxu0 0
        %921 = vmatpush1.bf16.msra.mxu0 0
        %922 = vmatprep.subr.bf16.mxu0 0
        %923 = vmatpush1.bf16.msra.mxu0 0
        %924 = vmatprep.subr.bf16.mxu0 0
        %925 = vmatpush1.bf16.msra.mxu0 0
        %926 = vmatprep.subr.bf16.mxu0 0
        %927 = vmatpush1.bf16.msra.mxu0 0
        %928 = vmatprep.subr.bf16.mxu0 0
        %929 = vmatpush1.bf16.msra.mxu0 0
        %930 = vmatprep.subr.bf16.mxu0 0
        %931 = vmatpush1.bf16.msra.mxu0 0
        %932 = vmatprep.subr.bf16.mxu0 0
        %933 = vmatpush1.bf16.msra.mxu0 0
        %934 = vmatprep.subr.bf16.mxu0 0
        %935 = vmatpush1.bf16.msra.mxu0 0
        %936 = vmatprep.subr.bf16.mxu0 0
        %937 = vmatpush1.bf16.msra.mxu0 0
        %938 = vmatprep.subr.bf16.mxu0 0
        %939 = vmatpush1.bf16.msra.mxu0 0
        %940 = vmatprep.subr.bf16.mxu0 0
        %941 = vmatpush1.bf16.msra.mxu0 0
        %942 = vmatprep.subr.bf16.mxu0 0
        %943 = vmatpush1.bf16.msra.mxu0 0
        %944 = vmatprep.subr.bf16.mxu0 0
        %945 = vmatpush1.bf16.msra.mxu0 0
        %946 = vmatprep.mubr.bf16.mxu0 0
        %947 = vmatmul.mubr.bf16.gmra.mrb[0].mxu0 %v909
        %v948 = vpop.f32.mrb[0].mxu0
        %v949 = vadd.f32 0.0, %v948
        %v950 = vpop.f32.mrb[0].mxu0
        %v951 = vpop.f32.mrb[0].mxu0
        %v952 = vpop.f32.mrb[0].mxu0
        %953 = vdwg.mxu0
        %v954 = vadd.f32 %v795, %v949
        %s955 = scalar_lea.vmem %s454, 12
        %v956 = vld [vmem:[%s955] sm:$0xf]
        %s957 = scalar_lea.vmem %s459, 12
        %v958 = vld [vmem:[%s957] sm:$0xf]
        %s959 = scalar_lea.vmem %s464, 12
        %v960 = vld [vmem:[%s959] sm:$0xf]
        %v962 = vsel %vm482, %v956, 0
        %v965 = vsel %vm482, %v958, 0
        %967 = vmatprep.subr.bf16.mxu0 0
        %968 = vmatpush1.bf16.xpose.msra.mxu0 %v965
        %969 = vmatprep.subr.bf16.mxu0 0
        %970 = vmatpush1.bf16.xpose.msra.mxu0 0
        %971 = vmatprep.subr.bf16.mxu0 0
        %972 = vmatpush1.bf16.xpose.msra.mxu0 0
        %973 = vmatprep.subr.bf16.mxu0 0
        %974 = vmatpush1.bf16.xpose.msra.mxu0 0
        %975 = vmatprep.subr.bf16.mxu0 0
        %976 = vmatpush1.bf16.xpose.msra.mxu0 0
        %977 = vmatprep.subr.bf16.mxu0 0
        %978 = vmatpush1.bf16.xpose.msra.mxu0 0
        %979 = vmatprep.subr.bf16.mxu0 0
        %980 = vmatpush1.bf16.xpose.msra.mxu0 0
        %981 = vmatprep.subr.bf16.mxu0 0
        %982 = vmatpush1.bf16.xpose.msra.mxu0 0
        %983 = vmatprep.subr.bf16.mxu0 0
        %984 = vmatpush1.bf16.xpose.msra.mxu0 0
        %985 = vmatprep.subr.bf16.mxu0 0
        %986 = vmatpush1.bf16.xpose.msra.mxu0 0
        %987 = vmatprep.subr.bf16.mxu0 0
        %988 = vmatpush1.bf16.xpose.msra.mxu0 0
        %989 = vmatprep.subr.bf16.mxu0 0
        %990 = vmatpush1.bf16.xpose.msra.mxu0 0
        %991 = vmatprep.subr.bf16.mxu0 0
        %992 = vmatpush1.bf16.xpose.msra.mxu0 0
        %993 = vmatprep.subr.bf16.mxu0 0
        %994 = vmatpush1.bf16.xpose.msra.mxu0 0
        %995 = vmatprep.subr.bf16.mxu0 0
        %996 = vmatpush1.bf16.xpose.msra.mxu0 0
        %997 = vmatprep.subr.bf16.mxu0 0
        %998 = vmatpush1.bf16.xpose.msra.mxu0 0
        %999 = vmatprep.mubr.bf16.mxu0 0
        %1000 = vmatmul.mubr.bf16.gmra.mrb[0].mxu0 %v962
        %v1001 = vpop.f32.mrb[0].mxu0
        %v1002 = vadd.f32 0.0, %v1001
        %v1003 = vpop.f32.mrb[0].mxu0
        %v1004 = vpop.f32.mrb[0].mxu0
        %v1005 = vpop.f32.mrb[0].mxu0
        %1006 = vdwg.mxu0
        %v1007 = vsel %vm482, %v1002, -inf
        %1008 = vmax.xlane.f32.xlu0 %v1007
        %v1009 = vpop.xlane.xlu0 %1008
        %v1010 = vsub.f32 %v1002, %v1009
        %v1011 = vmul.f32 %v1010, 1.442695
        %v1012 = vpow.pop %v1011
        %v1013 = vsel %vm482, %v1012, 0.0
        %1014 = vadd.xlane.f32.xlu0 %v1013
        %v1015 = vpop.xlane.xlu0 %1014
        %v1016 = vrcp.pop %v1015
        %v1017 = vmul.f32 %v1012, %v1016
        %v1018 = vpack.c.bf16 %v1017, %v1017
        %v1020 = vsel %vm482, %v1018, 0
        %v1023 = vsel %vm544, %v960, 0
        %1025 = vmatprep.subr.bf16.mxu0 0
        %1026 = vmatpush1.bf16.msra.mxu0 %v1023
        %1027 = vmatprep.subr.bf16.mxu0 0
        %1028 = vmatpush1.bf16.msra.mxu0 0
        %1029 = vmatprep.subr.bf16.mxu0 0
        %1030 = vmatpush1.bf16.msra.mxu0 0
        %1031 = vmatprep.subr.bf16.mxu0 0
        %1032 = vmatpush1.bf16.msra.mxu0 0
        %1033 = vmatprep.subr.bf16.mxu0 0
        %1034 = vmatpush1.bf16.msra.mxu0 0
        %1035 = vmatprep.subr.bf16.mxu0 0
        %1036 = vmatpush1.bf16.msra.mxu0 0
        %1037 = vmatprep.subr.bf16.mxu0 0
        %1038 = vmatpush1.bf16.msra.mxu0 0
        %1039 = vmatprep.subr.bf16.mxu0 0
        %1040 = vmatpush1.bf16.msra.mxu0 0
        %1041 = vmatprep.subr.bf16.mxu0 0
        %1042 = vmatpush1.bf16.msra.mxu0 0
        %1043 = vmatprep.subr.bf16.mxu0 0
        %1044 = vmatpush1.bf16.msra.mxu0 0
        %1045 = vmatprep.subr.bf16.mxu0 0
        %1046 = vmatpush1.bf16.msra.mxu0 0
        %1047 = vmatprep.subr.bf16.mxu0 0
        %1048 = vmatpush1.bf16.msra.mxu0 0
        %1049 = vmatprep.subr.bf16.mxu0 0
        %1050 = vmatpush1.bf16.msra.mxu0 0
        %1051 = vmatprep.subr.bf16.mxu0 0
        %1052 = vmatpush1.bf16.msra.mxu0 0
        %1053 = vmatprep.subr.bf16.mxu0 0
        %1054 = vmatpush1.bf16.msra.mxu0 0
        %1055 = vmatprep.subr.bf16.mxu0 0
        %1056 = vmatpush1.bf16.msra.mxu0 0
        %1057 = vmatprep.mubr.bf16.mxu0 0
        %1058 = vmatmul.mubr.bf16.gmra.mrb[0].mxu0 %v1020
        %v1059 = vpop.f32.mrb[0].mxu0
        %v1060 = vadd.f32 0.0, %v1059
        %v1061 = vpop.f32.mrb[0].mxu0
        %v1062 = vpop.f32.mrb[0].mxu0
        %v1063 = vpop.f32.mrb[0].mxu0
        %1064 = vdwg.mxu0
        %v1065 = vpack.c.bf16 %v1060, %v1060
        %v1066 = vld [vmem:[%s4 + $0xc] sm:$0xf]
        %v1068 = vsel %vm482, %v1065, 0
        %v1071 = vsel %vm544, %v1066, 0
        %1073 = vmatprep.subr.bf16.mxu0 0
        %1074 = vmatpush1.bf16.msra.mxu0 %v1071
        %1075 = vmatprep.subr.bf16.mxu0 0
        %1076 = vmatpush1.bf16.msra.mxu0 0
        %1077 = vmatprep.subr.bf16.mxu0 0
        %1078 = vmatpush1.bf16.msra.mxu0 0
        %1079 = vmatprep.subr.bf16.mxu0 0
        %1080 = vmatpush1.bf16.msra.mxu0 0
        %1081 = vmatprep.subr.bf16.mxu0 0
        %1082 = vmatpush1.bf16.msra.mxu0 0
        %1083 = vmatprep.subr.bf16.mxu0 0
        %1084 = vmatpush1.bf16.msra.mxu0 0
        %1085 = vmatprep.subr.bf16.mxu0 0
        %1086 = vmatpush1.bf16.msra.mxu0 0
        %1087 = vmatprep.subr.bf16.mxu0 0
        %1088 = vmatpush1.bf16.msra.mxu0 0
        %1089 = vmatprep.subr.bf16.mxu0 0
        %1090 = vmatpush1.bf16.msra.mxu0 0
        %1091 = vmatprep.subr.bf16.mxu0 0
        %1092 = vmatpush1.bf16.msra.mxu0 0
        %1093 = vmatprep.subr.bf16.mxu0 0
        %1094 = vmatpush1.bf16.msra.mxu0 0
        %1095 = vmatprep.subr.bf16.mxu0 0
        %1096 = vmatpush1.bf16.msra.mxu0 0
        %1097 = vmatprep.subr.bf16.mxu0 0
        %1098 = vmatpush1.bf16.msra.mxu0 0
        %1099 = vmatprep.subr.bf16.mxu0 0
        %1100 = vmatpush1.bf16.msra.mxu0 0
        %1101 = vmatprep.subr.bf16.mxu0 0
        %1102 = vmatpush1.bf16.msra.mxu0 0
        %1103 = vmatprep.subr.bf16.mxu0 0
        %1104 = vmatpush1.bf16.msra.mxu0 0
        %1105 = vmatprep.mubr.bf16.mxu0 0
        %1106 = vmatmul.mubr.bf16.gmra.mrb[0].mxu0 %v1068
        %v1107 = vpop.f32.mrb[0].mxu0
        %v1108 = vadd.f32 0.0, %v1107
        %v1109 = vpop.f32.mrb[0].mxu0
        %v1110 = vpop.f32.mrb[0].mxu0
        %v1111 = vpop.f32.mrb[0].mxu0
        %1112 = vdwg.mxu0
        %v1113 = vadd.f32 %v954, %v1108
        %v1114 = vld [vmem:[%s6] sm:$0x1]
        %v1115 = vld [vmem:[%s7] sm:$0x1]
        %vm1116 = vcmask 261120
        %v1117 = vsel %vm1116, %v1113, 0.0
        %1118 = vadd.xlane.f32.xlu0 %v1117
        %v1119 = vpop.xlane.xlu0 %1118
        %v1120 = vrcp.pop 32.0
        %v1121 = vmul.f32 %v1119, %v1120
        %v1122 = vsub.f32 %v1113, %v1121
        %v1123 = vmul.f32 %v1122, %v1122
        %v1124 = vsel %vm1116, %v1123, 0.0
        %1125 = vadd.xlane.f32.xlu0 %v1124
        %v1126 = vpop.xlane.xlu0 %1125
        %v1127 = vmul.f32 %v1126, %v1120
        %v1128 = vadd.f32 %v1127, 1e-05
        %v1129 = vrsqrt.pop %v1128
        %v1130 = vmul.f32 %v1122, %v1129
        %v1132 = vlaneseq
        %v1133 = vshrl.u32 %v1132, 7
        %v1134 = vsub.s32 0, %v1133
        %v1135 = vrot.slane %v1114, %v1134
        %v1137 = vmul.f32 %v1130, %v1135
        %v1139 = vlaneseq
        %v1140 = vshrl.u32 %v1139, 7
        %v1141 = vsub.s32 0, %v1140
        %v1142 = vrot.slane %v1115, %v1141
        %v1144 = vadd.f32 %v1137, %v1142
        %v1145 = vpack.c.bf16 %v1144, %v1144
        %v1146 = vld [vmem:[%s8] sm:$0xf]
        %v1147 = vld [vmem:[%s8 + $0x4] sm:$0xf]
        %v1148 = vld [vmem:[%s8 + $0x8] sm:$0xf]
        %v1149 = vld [vmem:[%s8 + $0xc] sm:$0xf]
        %v1150 = vld [vmem:[%s9] sm:$0x1]
        %v1152 = vlaneseq
        %v1153 = vshrl.u32 %v1152, 7
        %v1154 = vsub.s32 0, %v1153
        %v1155 = vrot.slane %v1150, %v1154
        %v1161 = vunpack.c.l.b16 %v1146
        %v1162 = vunpack.c.l.b16 %v1147
        %v1163 = vunpack.c.l.b16 %v1148
        %v1164 = vunpack.c.l.b16 %v1149
        %v1165 = vpack.c.b16 %v1162, %v1161
        %v1166 = vpack.c.b16 %v1164, %v1163
        %v1170 = vsel %vm1116, %v1145, 0
        %1172 = vmatprep.subr.bf16.mxu0 0
        %1173 = vmatpush1.bf16.msra.mxu0 %v1165
        %1174 = vmatprep.subr.bf16.mxu0 0
        %1175 = vmatpush1.bf16.msra.mxu0 %v1166
        %1176 = vmatprep.subr.bf16.mxu0 0
        %1177 = vmatpush1.bf16.msra.mxu0 0
        %1178 = vmatprep.subr.bf16.mxu0 0
        %1179 = vmatpush1.bf16.msra.mxu0 0
        %1180 = vmatprep.subr.bf16.mxu0 0
        %1181 = vmatpush1.bf16.msra.mxu0 0
        %1182 = vmatprep.subr.bf16.mxu0 0
        %1183 = vmatpush1.bf16.msra.mxu0 0
        %1184 = vmatprep.subr.bf16.mxu0 0
        %1185 = vmatpush1.bf16.msra.mxu0 0
        %1186 = vmatprep.subr.bf16.mxu0 0
        %1187 = vmatpush1.bf16.msra.mxu0 0
        %1188 = vmatprep.subr.bf16.mxu0 0
        %1189 = vmatpush1.bf16.msra.mxu0 0
        %1190 = vmatprep.subr.bf16.mxu0 0
        %1191 = vmatpush1.bf16.msra.mxu0 0
        %1192 = vmatprep.subr.bf16.mxu0 0
        %1193 = vmatpush1.bf16.msra.mxu0 0
        %1194 = vmatprep.subr.bf16.mxu0 0
        %1195 = vmatpush1.bf16.msra.mxu0 0
        %1196 = vmatprep.subr.bf16.mxu0 0
        %1197 = vmatpush1.bf16.msra.mxu0 0
        %1198 = vmatprep.subr.bf16.mxu0 0
        %1199 = vmatpush1.bf16.msra.mxu0 0
        %1200 = vmatprep.subr.bf16.mxu0 0
        %1201 = vmatpush1.bf16.msra.mxu0 0
        %1202 = vmatprep.subr.bf16.mxu0 0
        %1203 = vmatpush1.bf16.msra.mxu0 0
        %1204 = vmatprep.mubr.bf16.mxu0 0
        %1205 = vmatmul.mubr.bf16.gmra.mrb[0].mxu0 %v1170
        %v1206 = vpop.f32.mrb[0].mxu0
        %v1207 = vadd.f32 %v1155, %v1206
        %v1208 = vpop.f32.mrb[0].mxu0
        %v1209 = vpop.f32.mrb[0].mxu0
        %v1210 = vpop.f32.mrb[0].mxu0
        %1211 = vdwg.mxu0
        %v1212 = vmul.f32 %v1207, 0.5
        %v1213 = vmul.f32 %v1207, 0.70710677
        %v1214 = verf.f32.pop %v1213
        %v1215 = vadd.f32 %v1214, 1.0
        %v1216 = vmul.f32 %v1212, %v1215
        %v1217 = vpack.c.bf16 %v1216, %v1216
        %v1218 = vld [vmem:[%s10] sm:$0xf]
        %v1219 = vld [vmem:[%s10 + $0x4] sm:$0xf]
        %v1220 = vld [vmem:[%s10 + $0x8] sm:$0xf]
        %v1221 = vld [vmem:[%s10 + $0xc] sm:$0xf]
        %v1222 = vld [vmem:[%s10 + $0x10] sm:$0xf]
        %v1223 = vld [vmem:[%s10 + $0x14] sm:$0xf]
        %v1224 = vld [vmem:[%s10 + $0x18] sm:$0xf]
        %v1225 = vld [vmem:[%s10 + $0x1c] sm:$0xf]
        %v1226 = vld [vmem:[%s11] sm:$0x1]
        %v1228 = vlaneseq
        %v1229 = vshrl.u32 %v1228, 7
        %v1230 = vsub.s32 0, %v1229
        %v1231 = vrot.slane %v1226, %v1230
        %v1241 = vunpack.c.l.b16 %v1218
        %v1242 = vunpack.c.l.b16 %v1219
        %v1243 = vunpack.c.l.b16 %v1220
        %v1244 = vunpack.c.l.b16 %v1221
        %v1245 = vunpack.c.l.b16 %v1222
        %v1246 = vunpack.c.l.b16 %v1223
        %v1247 = vunpack.c.l.b16 %v1224
        %v1248 = vunpack.c.l.b16 %v1225
        %v1249 = vpack.c.b16 %v1242, %v1241
        %v1250 = vpack.c.b16 %v1244, %v1243
        %v1251 = vpack.c.b16 %v1246, %v1245
        %v1252 = vpack.c.b16 %v1248, %v1247
        %vm1257 = vcmask 523264
        %v1259 = vsel %vm1257, %v1217, 0
        %1261 = vmatprep.subr.bf16.mxu0 0
        %1262 = vmatpush1.bf16.msra.mxu0 %v1249
        %1263 = vmatprep.subr.bf16.mxu0 0
        %1264 = vmatpush1.bf16.msra.mxu0 %v1250
        %1265 = vmatprep.subr.bf16.mxu0 0
        %1266 = vmatpush1.bf16.msra.mxu0 %v1251
        %1267 = vmatprep.subr.bf16.mxu0 0
        %1268 = vmatpush1.bf16.msra.mxu0 %v1252
        %1269 = vmatprep.subr.bf16.mxu0 0
        %1270 = vmatpush1.bf16.msra.mxu0 0
        %1271 = vmatprep.subr.bf16.mxu0 0
        %1272 = vmatpush1.bf16.msra.mxu0 0
        %1273 = vmatprep.subr.bf16.mxu0 0
        %1274 = vmatpush1.bf16.msra.mxu0 0
        %1275 = vmatprep.subr.bf16.mxu0 0
        %1276 = vmatpush1.bf16.msra.mxu0 0
        %1277 = vmatprep.subr.bf16.mxu0 0
        %1278 = vmatpush1.bf16.msra.mxu0 0
        %1279 = vmatprep.subr.bf16.mxu0 0
        %1280 = vmatpush1.bf16.msra.mxu0 0
        %1281 = vmatprep.subr.bf16.mxu0 0
        %1282 = vmatpush1.bf16.msra.mxu0 0
        %1283 = vmatprep.subr.bf16.mxu0 0
        %1284 = vmatpush1.bf16.msra.mxu0 0
        %1285 = vmatprep.subr.bf16.mxu0 0
        %1286 = vmatpush1.bf16.msra.mxu0 0
        %1287 = vmatprep.subr.bf16.mxu0 0
        %1288 = vmatpush1.bf16.msra.mxu0 0
        %1289 = vmatprep.subr.bf16.mxu0 0
        %1290 = vmatpush1.bf16.msra.mxu0 0
        %1291 = vmatprep.subr.bf16.mxu0 0
        %1292 = vmatpush1.bf16.msra.mxu0 0
        %1293 = vmatprep.mubr.bf16.mxu0 0
        %1294 = vmatmul.mubr.bf16.gmra.mrb[0].mxu0 %v1259
        %v1295 = vpop.f32.mrb[0].mxu0
        %v1296 = vadd.f32 %v1231, %v1295
        %v1297 = vpop.f32.mrb[0].mxu0
        %v1298 = vpop.f32.mrb[0].mxu0
        %v1299 = vpop.f32.mrb[0].mxu0
        %1300 = vdwg.mxu0
        %v1301 = vadd.f32 %v1296, %v1113
        %1302 = vst.msk [vmem:[%s449] sm:$0xff] %vm1116, %v1301
        %s1303 = sand.u32 %s306, 1
        %s1304 = scalar_lea.sflag [#allocation3], %s1303
        %s1305 = sand.u32 %s306, 1
        %s1306 = smul.addr %s1305, 8
        %s1307 = scalar_lea.vmem [#allocation2], %s1306
        // Predicated region
        $region69: #{encoder_block.3} parent=67 // pred_check
          %p1308 = pneg %p316
        $region70: #{encoder_block.3} parent=67 // pred_check_branch
          %1310 = sbr.rel (%p1308) target = $region72
        $region71: #{encoder_block.3} parent=67 // pred_region
          %s1312 = ssub.s32 128, 128
          %1313 = vsyncadd %s1304, %s1312
          %s1314 = smul.addr %s26, 128
          %s1315 = scalar_lea.hbm %s12, %s1314
          %s1317 = sshll.u32 %s1307, 4
          %s1318 = int_to_ptr.vmem [resolvable:$true] %s1317
          %1320 = dma.vmem_to_hbm [thread:$0]  %s1318, 128, %s1315, %s1304
        $region72: #{encoder_block.3} parent=67 // pred_fallthru
          _
      $region68: #{encoder_block.3} parent=5 // pred_fallthru
        _
      %p1321 = scmp.le.s32.totalorder 2, %s21
      // Predicated region
      $region73: #{encoder_block.3} parent=5 // pred_check
        %p1322 = pneg %p1321
      $region74: #{encoder_block.3} parent=5 // pred_check_branch
        %1324 = sbr.rel (%p1322) target = $region76
      $region75: #{encoder_block.3} parent=5 // pred_region
        %s1325 = ssub.s32 %s21, 2
        // Predicated region
        $region77: #{encoder_block.3} parent=75 // pred_check
          %p1326 = pneg %p322
        $region78: #{encoder_block.3} parent=75 // pred_check_branch
          %1328 = sbr.rel (%p1326) target = $region80
        $region79: #{encoder_block.3} parent=75 // pred_region
          %s1329 = sand.u32 %s307, 1
          %s1330 = scalar_lea.sflag [#allocation3], %s1329
          %s1331 = sand.u32 %s307, 1
          %s1332 = smul.addr %s1331, 8
          %s1333 = scalar_lea.vmem [#allocation2], %s1332
          %1334 = dma.done %s1330, 128
        $region80: #{encoder_block.3} parent=75 // pred_fallthru
          _
      $region76: #{encoder_block.3} parent=5 // pred_fallthru
        _
    $region6: #{encoder_block.3} parent=1 // loop_footer
      %s25 = sadd.s32 1, %s21
    $region7: #{encoder_block.3} parent=1 // loop_footer_branch
      %20 = sbr.rel target = $region3
    $region8: #{encoder_block.3} parent=1 // loop_exit
      _
    %1335 = vsyncpa [#allocation3], 1
    %s1336 = scalar_lea.sflag [#allocation3], 1
    %1337 = vsyncpa %s1336, 1

</llo_original>
